<compile_context>
chip_gen: v7x
topology: tpu7x:2x2x1
jax: 0.10.0
libtpu: 0.0.40
codegen_flags: <defaults>
</compile_context>

<pallas_src>
import functools
import math
import numpy as np
import jax
import jax.numpy as jnp
from jax.experimental import pallas as pl
from jax.experimental.pallas import tpu as pltpu

_INV_SQRT2 = 1.0 / math.sqrt(2.0)


def _round_up(x, m):
    return ((x + m - 1) // m) * m


def _erf_approx(x):
    # Abramowitz & Stegun 7.1.26, max abs error ~1.5e-7 (well inside the 1e-4
    # parity tolerance vs exact erf); uses only exp/mul/add/select so it is
    # guaranteed to lower on Mosaic (exp runs on the EUP slot).
    a = jnp.abs(x)
    t = 1.0 / (1.0 + 0.3275911 * a)
    poly = ((((1.061405429 * t - 1.453152027) * t + 1.421413741) * t
             - 0.284496736) * t + 0.254829592) * t
    y = 1.0 - poly * jnp.exp(-a * a)
    return jnp.where(x >= 0.0, y, -y)


def _gelu_exact(h):
    # PyTorch nn.GELU() default = exact (erf) variant.
    # TODO(synk): optional tanh-approx GELU would move work to the EUP slot if
    # bit-level parity with nn.GELU() is not required.
    return 0.5 * h * (1.0 + _erf_approx(h * _INV_SQRT2))


# ----------------------------- Pallas kernels ------------------------------

def _sin_mlp_fused_kernel(t_ref, freqs2_ref, w1_ref, b1_ref, w2_ref, b2_ref,
                          o_ref, *, half, d_out):
    # SinusoidalPosEmb -> Linear -> GELU -> Linear with a single W1 dot:
    # freqs are laid out twice along the lane axis, sin/cos selected by a
    # lane-iota compare (one VPU select, no lane concat).
    t = t_ref[...]                                          # (TN, 1)
    emb = t * freqs2_ref[...]                               # (TN, 128)
    lane = jax.lax.broadcasted_iota(jnp.int32, emb.shape, 1)
    feat = jnp.where(lane < half, jnp.sin(emb), jnp.cos(emb))
    h = jnp.dot(feat, w1_ref[...], preferred_element_type=jnp.float32) + b1_ref[...]
    h = _gelu_exact(h)
    out = jnp.dot(h, w2_ref[...], preferred_element_type=jnp.float32) + b2_ref[...]
    o_ref[...] = out[:, :d_out].astype(o_ref.dtype)         # direct (TN, d) store


def _sin_mlp_split_kernel(t_ref, freqs_ref, w1s_ref, w1c_ref, b1_ref, w2_ref,
                          b2_ref, o_ref, *, d_out):
    # Fallback for time_emb_dim > 128: W1 split into sin/cos halves (two dots).
    t = t_ref[...]
    emb = t * freqs_ref[...]
    h = (jnp.dot(jnp.sin(emb), w1s_ref[...], preferred_element_type=jnp.float32)
         + jnp.dot(jnp.cos(emb), w1c_ref[...], preferred_element_type=jnp.float32)
         + b1_ref[...])
    h = _gelu_exact(h)
    out = jnp.dot(h, w2_ref[...], preferred_element_type=jnp.float32) + b2_ref[...]
    o_ref[...] = out[:, :d_out].astype(o_ref.dtype)


def _rbf_feat(t, centers, width):
    # RBF.forward: exp(-0.5*((x-c)/w)^2), then F.normalize(p=1, dim=-1)*2-1.
    # Padded centers are far outside [0,1] -> exp underflows to exactly 0, so
    # the L1 sum over the padded axis equals the sum over real centers.
    z = (t - centers) * (1.0 / width)
    ret = jnp.exp(-0.5 * z * z)
    denom = jnp.maximum(jnp.sum(ret, axis=-1, keepdims=True), 1e-12)   # ret >= 0
    # Explicit reciprocal-then-multiply: the divide stays (TN, 1); the wide op
    # is a multiply.  TODO(synk): pl.reciprocal(denom, approx=True) would use
    # the idle EUP slot but is borderline vs the 1e-4 parity tolerance.
    inv = 1.0 / denom
    return ret * inv * 2.0 - 1.0


def _rbf_kernel(t_ref, centers_ref, o_ref, *, width, d_out):
    feat = _rbf_feat(t_ref[...], centers_ref[...], width)
    o_ref[...] = feat[:, :d_out].astype(o_ref.dtype)


def _rbf_mlp_kernel(t_ref, centers_ref, w1_ref, b1_ref, w2_ref, b2_ref, o_ref,
                    *, width, d_out):
    feat = _rbf_feat(t_ref[...], centers_ref[...], width)      # (TN, D_PAD)
    # Padded feature lanes are -1 but the matching w1 rows are zero -> inert.
    h = jnp.dot(feat, w1_ref[...], preferred_element_type=jnp.float32) + b1_ref[...]
    h = _gelu_exact(h)
    out = jnp.dot(h, w2_ref[...], preferred_element_type=jnp.float32) + b2_ref[...]
    o_ref[...] = out[:, :d_out].astype(o_ref.dtype)


# ------------------------------ layer wrapper -------------------------------

class TimeEmbedLayer:
    """JAX/Pallas port of the PyTorch TimeEmbedLayer."""

    MAX_ROW_TILE = 2048             # rows per grid step (large -> fewer per-step overheads)
    VMEM_BUDGET = 24 * (1 << 20)    # working-set target, portable to v7x (64 MiB physical)

    def __init__(self, time_emb_mode, time_emb_dim, key):
        self.time_emb_mode = time_emb_mode
        self.time_emb_dim = time_emb_dim
        d = time_emb_dim

        if time_emb_mode == 'simple':
            assert time_emb_dim == 1
            return

        self.d_pad = _round_up(d, 128)

        if time_emb_mode in ('sin', 'rbfnn'):
            self.h_pad = _round_up(4 * d, 128)
            k1, k2, k3, k4 = jax.random.split(key, 4)
            # deterministic synthetic weights (Linear(d, 4d), Linear(4d, d)),
            # stored (in_features, out_features) so forward is x @ W + b
            self.w1 = jax.random.normal(k1, (d, 4 * d), jnp.float32) * 0.1
            self.b1 = jax.random.normal(k2, (4 * d,), jnp.float32) * 0.1
            self.w2 = jax.random.normal(k3, (4 * d, d), jnp.float32) * 0.1
            self.b2 = jax.random.normal(k4, (d,), jnp.float32) * 0.1
            # zero-padded (lane-dense) resident copies used by the kernels
            self.b1_pad = jnp.zeros((1, self.h_pad), jnp.float32).at[0, :4 * d].set(self.b1)
            self.w2_pad = jnp.zeros((self.h_pad, self.d_pad), jnp.float32).at[:4 * d, :d].set(self.w2)
            self.b2_pad = jnp.zeros((1, self.d_pad), jnp.float32).at[0, :d].set(self.b2)
            # TODO(synk): optionally store w1/w2 as bf16 and cast activations to
            # bf16 before each dot for v6e/v7x MXU throughput + half the weight
            # VMEM; kept f32 here to hold the exact-f32 1e-4 parity tolerance.

        if time_emb_mode == 'sin':
            assert d % 2 == 0 and d >= 4, "'sin' mode needs an even time_emb_dim >= 4"
            half = d // 2
            self.half = half
            c = math.log(10000.0) / (half - 1)
            self.freqs = jnp.exp(jnp.arange(half, dtype=jnp.float32) * -c)
            if d <= 128:
                # fused path: freqs laid out twice, W1 used as one (128, h_pad) tile
                self.freqs2_pad = (jnp.zeros((1, 128), jnp.float32)
                                   .at[0, :half].set(self.freqs)
                                   .at[0, half:d].set(self.freqs))
                self.w1_fused_pad = (jnp.zeros((128, self.h_pad), jnp.float32)
                                     .at[:d, :4 * d].set(self.w1))
            else:
                self.half_pad = _round_up(half, 128)
                self.freqs_pad = (jnp.zeros((1, self.half_pad), jnp.float32)
                                  .at[0, :half].set(self.freqs))
                self.w1_sin_pad = (jnp.zeros((self.half_pad, self.h_pad), jnp.float32)
                                   .at[:half, :4 * d].set(self.w1[:half]))
                self.w1_cos_pad = (jnp.zeros((self.half_pad, self.h_pad), jnp.float32)
                                   .at[:half, :4 * d].set(self.w1[half:]))
        elif time_emb_mode in ('rbf', 'rbfnn'):
            # RBF(0, 1, d): centers = linspace(0, 1, d), width = 1 / d
            self.centers = jnp.linspace(0.0, 1.0, d, dtype=jnp.float32)
            self.width = 1.0 / d
            # pad centers far outside [0,1] -> exp underflows to exactly 0
            self.centers_pad = (jnp.full((1, self.d_pad), 1e4, jnp.float32)
                                .at[0, :d].set(self.centers))
            if time_emb_mode == 'rbfnn':
                self.w1_pad = (jnp.zeros((self.d_pad, self.h_pad), jnp.float32)
                               .at[:d, :4 * d].set(self.w1))
        else:
            raise NotImplementedError(time_emb_mode)

    # ------------------------- VMEM budget & tiling --------------------------
    def _vmem_bytes(self, tn, consts, d_out):
        h = getattr(self, "h_pad", self.d_pad)
        const_b = 2 * sum(int(np.prod(a.shape)) * 4 for a in consts)   # worst case 2 bufs
        io_b = 2 * tn * 4 + 2 * tn * d_out * 4                         # t + out, double-buffered
        interm_b = 2 * tn * (self.d_pad + h) * 4                       # live f32 feature/hidden
        return const_b + io_b + interm_b

    def _pick_tile(self, n, consts, d_out):
        # >= 2 grid steps when possible so both v7x TensorCores get work; cap
        # at MAX_ROW_TILE and clamp to the VMEM working-set budget.
        tn = min(self.MAX_ROW_TILE, max(8, _round_up(pl.cdiv(max(n, 8), 2), 8)))
        while tn > 8 and self._vmem_bytes(tn, consts, d_out) > self.VMEM_BUDGET:
            tn = max(8, _round_up(tn // 2, 8))
        return tn

    # -------- shared pallas_call wrapper: batch-tiled grid, resident params ----
    def _run(self, kernel, consts, t2, flops, transcendentals):
        n = t2.shape[0]
        d_out = self.time_emb_dim
        tn = self._pick_tile(n, consts, d_out)
        grid = (pl.cdiv(n, tn),)       # partial last block: reads padded, stores masked
        vmem_limit = int(min(max(2 * self._vmem_bytes(tn, consts, d_out), 32 << 20),
                             48 << 20))
        bytes_accessed = 4 * (n * (1 + d_out)
                              + sum(int(np.prod(a.shape)) for a in consts))
        cost = pl.CostEstimate(flops=int(flops),
                               transcendentals=int(transcendentals),
                               bytes_accessed=int(bytes_accessed))

        def build(single_buffer_consts):
            in_specs = [pl.BlockSpec((tn, 1), lambda i: (i, 0))]            # t tile
            for a in consts:                                                # resident params
                idx = (lambda i, _nd=a.ndim: (0,) * _nd)
                if single_buffer_consts:
                    # constant index_map -> nothing to pipeline; halve resident VMEM
                    spec = pl.BlockSpec(a.shape, idx, pipeline_mode=pl.Buffered(1))
                else:
                    spec = pl.BlockSpec(a.shape, idx)
                in_specs.append(spec)
            return pl.pallas_call(
                kernel,
                out_shape=jax.ShapeDtypeStruct((n, d_out), jnp.float32),
                grid=grid,
                in_specs=in_specs,
                out_specs=pl.BlockSpec((tn, d_out), lambda i: (i, 0)),
                compiler_params=pltpu.CompilerParams(
                    dimension_semantics=("parallel",),
                    vmem_limit_bytes=vmem_limit),
                cost_estimate=cost,
            )

        try:
            return build(True)(t2, *consts)
        except Exception:
            # pipeline_mode=pl.Buffered(1) unavailable on this jax version ->
            # fall back to default (double-buffered) constant specs.
            return build(False)(t2, *consts)

    def __call__(self, t):
        if self.time_emb_mode == 'simple':
            return t                                                   # identity

        t2 = t.reshape(-1, 1).astype(jnp.float32)
        n = t2.shape[0]
        d = self.time_emb_dim

        if self.time_emb_mode == 'sin':
            if d <= 128:
                kernel = functools.partial(_sin_mlp_fused_kernel, half=d // 2, d_out=d)
                consts = (self.freqs2_pad, self.w1_fused_pad, self.b1_pad,
                          self.w2_pad, self.b2_pad)
                flops = 2 * n * self.h_pad * (128 + self.d_pad) + 20 * n * self.h_pad
                trans = n * (128 + self.h_pad)
            else:
                kernel = functools.partial(_sin_mlp_split_kernel, d_out=d)
                consts = (self.freqs_pad, self.w1_sin_pad, self.w1_cos_pad,
                          self.b1_pad, self.w2_pad, self.b2_pad)
                flops = (2 * n * self.h_pad * (2 * self.half_pad + self.d_pad)
                         + 20 * n * self.h_pad)
                trans = n * (2 * self.half_pad + self.h_pad)
            return self._run(kernel, consts, t2, flops, trans)

        if self.time_emb_mode == 'rbf':
            kernel = functools.partial(_rbf_kernel, width=self.width, d_out=d)
            return self._run(kernel, (self.centers_pad,), t2,
                             8 * n * self.d_pad, n * self.d_pad)

        if self.time_emb_mode == 'rbfnn':
            kernel = functools.partial(_rbf_mlp_kernel, width=self.width, d_out=d)
            consts = (self.centers_pad, self.w1_pad, self.b1_pad,
                      self.w2_pad, self.b2_pad)
            flops = 2 * n * self.h_pad * (2 * self.d_pad) + 20 * n * self.h_pad
            trans = n * (self.d_pad + self.h_pad)
            return self._run(kernel, consts, t2, flops, trans)

        raise NotImplementedError(self.time_emb_mode)


# ------------------------------ pure-JAX refs --------------------------------

def _ref_gelu(h):
    return 0.5 * h * (1.0 + jax.lax.erf(h / jnp.sqrt(2.0)))


def _ref_sin(t, layer):
    emb = t.reshape(-1)[:, None] * layer.freqs[None, :]
    feat = jnp.concatenate([jnp.sin(emb), jnp.cos(emb)], axis=-1)
    h = _ref_gelu(feat @ layer.w1 + layer.b1[None, :])
    return h @ layer.w2 + layer.b2[None, :]


def _ref_rbf_feat(t2, layer):
    z = (t2 - layer.centers[None, :]) / layer.width
    ret = jnp.exp(-0.5 * z * z)
    denom = jnp.maximum(jnp.sum(jnp.abs(ret), axis=-1, keepdims=True), 1e-12)
    return (ret / denom) * 2.0 - 1.0


def _ref_rbfnn(t2, layer):
    feat = _ref_rbf_feat(t2, layer)
    h = _ref_gelu(feat @ layer.w1 + layer.b1[None, :])
    return h @ layer.w2 + layer.b2[None, :]


# ----------------------------------- main ------------------------------------

if __name__ == "__main__":
    key = jax.random.PRNGKey(0)
    k_t, k_sin, k_rbfnn, k_big = jax.random.split(key, 4)

    N, DIM = 8, 16

    # 'sin' mode: PyTorch SinusoidalPosEmb expects 1-D t of shape (N,)
    t_sin = jax.random.uniform(k_t, (N,), jnp.float32)
    layer_sin = TimeEmbedLayer('sin', DIM, k_sin)
    out_sin = jax.block_until_ready(layer_sin(t_sin))
    assert out_sin.shape == (N, DIM)
    np.testing.assert_allclose(np.asarray(out_sin),
                               np.asarray(_ref_sin(t_sin, layer_sin)),
                               rtol=1e-4, atol=1e-4)

    # 'sin' with a multi-step grid + masked partial last block
    t_sin_big = jax.random.uniform(k_big, (300,), jnp.float32)
    out_sin_big = jax.block_until_ready(layer_sin(t_sin_big))
    np.testing.assert_allclose(np.asarray(out_sin_big),
                               np.asarray(_ref_sin(t_sin_big, layer_sin)),
                               rtol=1e-4, atol=1e-4)

    # 'rbf' / 'rbfnn' modes: t is (N, 1)
    t_rbf = jax.random.uniform(k_t, (N, 1), jnp.float32)
    layer_rbf = TimeEmbedLayer('rbf', DIM, k_sin)
    out_rbf = jax.block_until_ready(layer_rbf(t_rbf))
    np.testing.assert_allclose(np.asarray(out_rbf),
                               np.asarray(_ref_rbf_feat(t_rbf, layer_rbf)),
                               rtol=1e-4, atol=1e-4)

    layer_rbfnn = TimeEmbedLayer('rbfnn', DIM, k_rbfnn)
    out_rbfnn = jax.block_until_ready(layer_rbfnn(t_rbf))
    np.testing.assert_allclose(np.asarray(out_rbfnn),
                               np.asarray(_ref_rbfnn(t_rbf, layer_rbfnn)),
                               rtol=1e-4, atol=1e-4)

    # exercise the 2-step grid + partial last block path for rbfnn
    t_big = jax.random.uniform(k_big, (1050, 1), jnp.float32)
    out_big = jax.block_until_ready(layer_rbfnn(t_big))
    np.testing.assert_allclose(np.asarray(out_big),
                               np.asarray(_ref_rbfnn(t_big, layer_rbfnn)),
                               rtol=1e-4, atol=1e-4)

    # 'simple' mode: identity
    layer_simple = TimeEmbedLayer('simple', 1, key)
    out_simple = jax.block_until_ready(layer_simple(t_rbf))
    assert out_simple.shape == t_rbf.shape

    print("KERNEL_OK")
</pallas_src>

<mosaic_0001>
module attributes {stable_mosaic.version = 11 : i64} {
  func.func @_sin_mlp_fused_kernel(%arg0: i32, %arg1: memref<8x1xf32, #tpu.memory_space<vmem>>, %arg2: memref<1x128xf32, #tpu.memory_space<vmem>>, %arg3: memref<128x128xf32, #tpu.memory_space<vmem>>, %arg4: memref<1x128xf32, #tpu.memory_space<vmem>>, %arg5: memref<128x128xf32, #tpu.memory_space<vmem>>, %arg6: memref<1x128xf32, #tpu.memory_space<vmem>>, %arg7: memref<8x16xf32, #tpu.memory_space<vmem>>) attributes {dimension_semantics = [#tpu.dimension_semantics<parallel>], iteration_bounds = array<i64: 1>, scalar_prefetch = 0 : i64, scratch_operands = 0 : i64, tpu.core_type = #tpu.core_type<tc>, window_params = [{transform_indices = @transform_0, window_bounds = array<i64: 8, 1>}, {pipeline_mode = #tpu.pipeline_mode<synchronous>, transform_indices = @transform_1, window_bounds = array<i64: 1, 128>}, {pipeline_mode = #tpu.pipeline_mode<synchronous>, transform_indices = @transform_2, window_bounds = array<i64: 128, 128>}, {pipeline_mode = #tpu.pipeline_mode<synchronous>, transform_indices = @transform_3, window_bounds = array<i64: 1, 128>}, {pipeline_mode = #tpu.pipeline_mode<synchronous>, transform_indices = @transform_4, window_bounds = array<i64: 128, 128>}, {pipeline_mode = #tpu.pipeline_mode<synchronous>, transform_indices = @transform_5, window_bounds = array<i64: 1, 128>}, {transform_indices = @transform_6, window_bounds = array<i64: 8, 16>}]} {
    %c0 = arith.constant 0 : index
    %c0_0 = arith.constant 0 : index
    %0 = vector.load %arg1[%c0, %c0_0] : memref<8x1xf32, #tpu.memory_space<vmem>>, vector<8x1xf32>
    %c0_1 = arith.constant 0 : index
    %c0_2 = arith.constant 0 : index
    %1 = vector.load %arg2[%c0_1, %c0_2] : memref<1x128xf32, #tpu.memory_space<vmem>>, vector<1x128xf32>
    %2 = vector.broadcast %0 : vector<8x1xf32> to vector<8x128xf32>
    %3 = vector.broadcast %1 : vector<1x128xf32> to vector<8x128xf32>
    %4 = arith.mulf %2, %3 : vector<8x128xf32>
    %5 = tpu.iota {dimensions = array<i32: 1>} : vector<8x128xi32>
    %c8_i32 = arith.constant 8 : i32
    %6 = vector.broadcast %c8_i32 : i32 to vector<8x128xi32>
    %7 = arith.cmpi slt, %5, %6 : vector<8x128xi32>
    %8 = math.sin %4 : vector<8x128xf32>
    %9 = math.cos %4 : vector<8x128xf32>
    %10 = arith.select %7, %8, %9 : vector<8x128xi1>, vector<8x128xf32>
    %c0_3 = arith.constant 0 : index
    %c0_4 = arith.constant 0 : index
    %11 = vector.load %arg3[%c0_3, %c0_4] : memref<128x128xf32, #tpu.memory_space<vmem>>, vector<128x128xf32>
    %cst = arith.constant dense<0.000000e+00> : vector<8x128xf32>
    %12 = tpu.matmul %10, %11, %cst {dimension_numbers = #tpu.dot_dimension_numbers<[1], [0], [0], [1], [0, 0, 1, 1], [], []>} : vector<8x128xf32>, vector<128x128xf32>, vector<8x128xf32> -> vector<8x128xf32>
    %c0_5 = arith.constant 0 : index
    %c0_6 = arith.constant 0 : index
    %13 = vector.load %arg4[%c0_5, %c0_6] : memref<1x128xf32, #tpu.memory_space<vmem>>, vector<1x128xf32>
    %14 = vector.broadcast %13 : vector<1x128xf32> to vector<8x128xf32>
    %15 = arith.addf %12, %14 : vector<8x128xf32>
    %cst_7 = arith.constant 5.000000e-01 : f32
    %16 = vector.broadcast %cst_7 : f32 to vector<8x128xf32>
    %17 = arith.mulf %16, %15 : vector<8x128xf32>
    %cst_8 = arith.constant 0.707106769 : f32
    %18 = vector.broadcast %cst_8 : f32 to vector<8x128xf32>
    %19 = arith.mulf %15, %18 : vector<8x128xf32>
    %20 = math.absf %19 : vector<8x128xf32>
    %cst_9 = arith.constant 0.327591091 : f32
    %21 = vector.broadcast %cst_9 : f32 to vector<8x128xf32>
    %22 = arith.mulf %21, %20 : vector<8x128xf32>
    %cst_10 = arith.constant 1.000000e+00 : f32
    %23 = vector.broadcast %cst_10 : f32 to vector<8x128xf32>
    %24 = arith.addf %23, %22 : vector<8x128xf32>
    %cst_11 = arith.constant 1.000000e+00 : f32
    %25 = vector.broadcast %cst_11 : f32 to vector<8x128xf32>
    %26 = arith.divf %25, %24 : vector<8x128xf32>
    %cst_12 = arith.constant 1.06140542 : f32
    %27 = vector.broadcast %cst_12 : f32 to vector<8x128xf32>
    %28 = arith.mulf %27, %26 : vector<8x128xf32>
    %cst_13 = arith.constant 1.45315206 : f32
    %29 = vector.broadcast %cst_13 : f32 to vector<8x128xf32>
    %30 = arith.subf %28, %29 : vector<8x128xf32>
    %31 = arith.mulf %30, %26 : vector<8x128xf32>
    %cst_14 = arith.constant 1.42141378 : f32
    %32 = vector.broadcast %cst_14 : f32 to vector<8x128xf32>
    %33 = arith.addf %31, %32 : vector<8x128xf32>
    %34 = arith.mulf %33, %26 : vector<8x128xf32>
    %cst_15 = arith.constant 0.284496725 : f32
    %35 = vector.broadcast %cst_15 : f32 to vector<8x128xf32>
    %36 = arith.subf %34, %35 : vector<8x128xf32>
    %37 = arith.mulf %36, %26 : vector<8x128xf32>
    %cst_16 = arith.constant 0.254829586 : f32
    %38 = vector.broadcast %cst_16 : f32 to vector<8x128xf32>
    %39 = arith.addf %37, %38 : vector<8x128xf32>
    %40 = arith.mulf %39, %26 : vector<8x128xf32>
    %cst_17 = arith.constant 0.000000e+00 : f32
    %41 = vector.broadcast %cst_17 : f32 to vector<8x128xf32>
    %42 = arith.subf %41, %20 : vector<8x128xf32>
    %43 = arith.mulf %42, %20 : vector<8x128xf32>
    %44 = math.exp %43 : vector<8x128xf32>
    %45 = arith.mulf %40, %44 : vector<8x128xf32>
    %cst_18 = arith.constant 1.000000e+00 : f32
    %46 = vector.broadcast %cst_18 : f32 to vector<8x128xf32>
    %47 = arith.subf %46, %45 : vector<8x128xf32>
    %cst_19 = arith.constant 0.000000e+00 : f32
    %48 = vector.broadcast %cst_19 : f32 to vector<8x128xf32>
    %49 = arith.cmpf oge, %19, %48 : vector<8x128xf32>
    %cst_20 = arith.constant 0.000000e+00 : f32
    %50 = vector.broadcast %cst_20 : f32 to vector<8x128xf32>
    %51 = arith.subf %50, %47 : vector<8x128xf32>
    %52 = arith.select %49, %47, %51 : vector<8x128xi1>, vector<8x128xf32>
    %cst_21 = arith.constant 1.000000e+00 : f32
    %53 = vector.broadcast %cst_21 : f32 to vector<8x128xf32>
    %54 = arith.addf %53, %52 : vector<8x128xf32>
    %55 = arith.mulf %17, %54 : vector<8x128xf32>
    %c0_22 = arith.constant 0 : index
    %c0_23 = arith.constant 0 : index
    %56 = vector.load %arg5[%c0_22, %c0_23] : memref<128x128xf32, #tpu.memory_space<vmem>>, vector<128x128xf32>
    %cst_24 = arith.constant dense<0.000000e+00> : vector<8x128xf32>
    %57 = tpu.matmul %55, %56, %cst_24 {dimension_numbers = #tpu.dot_dimension_numbers<[1], [0], [0], [1], [0, 0, 1, 1], [], []>} : vector<8x128xf32>, vector<128x128xf32>, vector<8x128xf32> -> vector<8x128xf32>
    %c0_25 = arith.constant 0 : index
    %c0_26 = arith.constant 0 : index
    %58 = vector.load %arg6[%c0_25, %c0_26] : memref<1x128xf32, #tpu.memory_space<vmem>>, vector<1x128xf32>
    %59 = vector.broadcast %58 : vector<1x128xf32> to vector<8x128xf32>
    %60 = arith.addf %57, %59 : vector<8x128xf32>
    %61 = vector.extract_strided_slice %60 {offsets = [0, 0], sizes = [8, 16], strides = [1, 1]} : vector<8x128xf32> to vector<8x16xf32>
    %c0_27 = arith.constant 0 : index
    %c0_28 = arith.constant 0 : index
    %62 = vector.load %arg7[%c0_27, %c0_28] : memref<8x16xf32, #tpu.memory_space<vmem>>, vector<8x16xf32>
    tpu.vector_store %arg7[%c0_27, %c0_28], %61 {strides = array<i32>} : memref<8x16xf32, #tpu.memory_space<vmem>>, vector<8x16xf32>,
    return
  }
  func.func @transform_0(%arg0: i32) -> (i32, i32) {
    %c0_i32 = arith.constant 0 : i32
    %c0_i32_0 = arith.constant 0 : i32
    return %arg0, %c0_i32 : i32, i32
  }
  func.func @transform_1(%arg0: i32) -> (i32, i32) {
    %c0_i32 = arith.constant 0 : i32
    %c0_i32_0 = arith.constant 0 : i32
    %c0_i32_1 = arith.constant 0 : i32
    return %c0_i32, %c0_i32_0 : i32, i32
  }
  func.func @transform_2(%arg0: i32) -> (i32, i32) {
    %c0_i32 = arith.constant 0 : i32
    %c0_i32_0 = arith.constant 0 : i32
    %c0_i32_1 = arith.constant 0 : i32
    return %c0_i32, %c0_i32_0 : i32, i32
  }
  func.func @transform_3(%arg0: i32) -> (i32, i32) {
    %c0_i32 = arith.constant 0 : i32
    %c0_i32_0 = arith.constant 0 : i32
    %c0_i32_1 = arith.constant 0 : i32
    return %c0_i32, %c0_i32_0 : i32, i32
  }
  func.func @transform_4(%arg0: i32) -> (i32, i32) {
    %c0_i32 = arith.constant 0 : i32
    %c0_i32_0 = arith.constant 0 : i32
    %c0_i32_1 = arith.constant 0 : i32
    return %c0_i32, %c0_i32_0 : i32, i32
  }
  func.func @transform_5(%arg0: i32) -> (i32, i32) {
    %c0_i32 = arith.constant 0 : i32
    %c0_i32_0 = arith.constant 0 : i32
    %c0_i32_1 = arith.constant 0 : i32
    return %c0_i32, %c0_i32_0 : i32, i32
  }
  func.func @transform_6(%arg0: i32) -> (i32, i32) {
    %c0_i32 = arith.constant 0 : i32
    %c0_i32_0 = arith.constant 0 : i32
    return %arg0, %c0_i32 : i32, i32
  }
}

module attributes {stable_mosaic.version = 11 : i64} {
  func.func @_sin_mlp_fused_kernel(%arg0: i32, %arg1: memref<8x1xf32, #tpu.memory_space<vmem>>, %arg2: memref<1x128xf32, #tpu.memory_space<vmem>>, %arg3: memref<128x128xf32, #tpu.memory_space<vmem>>, %arg4: memref<1x128xf32, #tpu.memory_space<vmem>>, %arg5: memref<128x128xf32, #tpu.memory_space<vmem>>, %arg6: memref<1x128xf32, #tpu.memory_space<vmem>>, %arg7: memref<8x16xf32, #tpu.memory_space<vmem>>) attributes {dimension_semantics = [#tpu.dimension_semantics<parallel>], iteration_bounds = array<i64: 1>, scalar_prefetch = 0 : i64, scratch_operands = 0 : i64, tpu.core_type = #tpu.core_type<tc>, window_params = [{transform_indices = @transform_0, window_bounds = array<i64: 8, 1>}, {pipeline_mode = #tpu.pipeline_mode<synchronous>, transform_indices = @transform_1, window_bounds = array<i64: 1, 128>}, {pipeline_mode = #tpu.pipeline_mode<synchronous>, transform_indices = @transform_2, window_bounds = array<i64: 128, 128>}, {pipeline_mode = #tpu.pipeline_mode<synchronous>, transform_indices = @transform_3, window_bounds = array<i64: 1, 128>}, {pipeline_mode = #tpu.pipeline_mode<synchronous>, transform_indices = @transform_4, window_bounds = array<i64: 128, 128>}, {pipeline_mode = #tpu.pipeline_mode<synchronous>, transform_indices = @transform_5, window_bounds = array<i64: 1, 128>}, {transform_indices = @transform_6, window_bounds = array<i64: 8, 16>}]} {
    %c0 = arith.constant 0 : index
    %c0_0 = arith.constant 0 : index
    %0 = vector.load %arg1[%c0, %c0_0] : memref<8x1xf32, #tpu.memory_space<vmem>>, vector<8x1xf32>
    %c0_1 = arith.constant 0 : index
    %c0_2 = arith.constant 0 : index
    %1 = vector.load %arg2[%c0_1, %c0_2] : memref<1x128xf32, #tpu.memory_space<vmem>>, vector<1x128xf32>
    %2 = vector.broadcast %0 : vector<8x1xf32> to vector<8x128xf32>
    %3 = vector.broadcast %1 : vector<1x128xf32> to vector<8x128xf32>
    %4 = arith.mulf %2, %3 : vector<8x128xf32>
    %5 = tpu.iota {dimensions = array<i32: 1>} : vector<8x128xi32>
    %c8_i32 = arith.constant 8 : i32
    %6 = vector.broadcast %c8_i32 : i32 to vector<8x128xi32>
    %7 = arith.cmpi slt, %5, %6 : vector<8x128xi32>
    %8 = math.sin %4 : vector<8x128xf32>
    %9 = math.cos %4 : vector<8x128xf32>
    %10 = arith.select %7, %8, %9 : vector<8x128xi1>, vector<8x128xf32>
    %c0_3 = arith.constant 0 : index
    %c0_4 = arith.constant 0 : index
    %11 = vector.load %arg3[%c0_3, %c0_4] : memref<128x128xf32, #tpu.memory_space<vmem>>, vector<128x128xf32>
    %cst = arith.constant dense<0.000000e+00> : vector<8x128xf32>
    %12 = tpu.matmul %10, %11, %cst {dimension_numbers = #tpu.dot_dimension_numbers<[1], [0], [0], [1], [0, 0, 1, 1], [], []>} : vector<8x128xf32>, vector<128x128xf32>, vector<8x128xf32> -> vector<8x128xf32>
    %c0_5 = arith.constant 0 : index
    %c0_6 = arith.constant 0 : index
    %13 = vector.load %arg4[%c0_5, %c0_6] : memref<1x128xf32, #tpu.memory_space<vmem>>, vector<1x128xf32>
    %14 = vector.broadcast %13 : vector<1x128xf32> to vector<8x128xf32>
    %15 = arith.addf %12, %14 : vector<8x128xf32>
    %cst_7 = arith.constant 5.000000e-01 : f32
    %16 = vector.broadcast %cst_7 : f32 to vector<8x128xf32>
    %17 = arith.mulf %16, %15 : vector<8x128xf32>
    %cst_8 = arith.constant 0.707106769 : f32
    %18 = vector.broadcast %cst_8 : f32 to vector<8x128xf32>
    %19 = arith.mulf %15, %18 : vector<8x128xf32>
    %20 = math.absf %19 : vector<8x128xf32>
    %cst_9 = arith.constant 0.327591091 : f32
    %21 = vector.broadcast %cst_9 : f32 to vector<8x128xf32>
    %22 = arith.mulf %21, %20 : vector<8x128xf32>
    %cst_10 = arith.constant 1.000000e+00 : f32
    %23 = vector.broadcast %cst_10 : f32 to vector<8x128xf32>
    %24 = arith.addf %23, %22 : vector<8x128xf32>
    %cst_11 = arith.constant 1.000000e+00 : f32
    %25 = vector.broadcast %cst_11 : f32 to vector<8x128xf32>
    %26 = arith.divf %25, %24 : vector<8x128xf32>
    %cst_12 = arith.constant 1.06140542 : f32
    %27 = vector.broadcast %cst_12 : f32 to vector<8x128xf32>
    %28 = arith.mulf %27, %26 : vector<8x128xf32>
    %cst_13 = arith.constant 1.45315206 : f32
    %29 = vector.broadcast %cst_13 : f32 to vector<8x128xf32>
    %30 = arith.subf %28, %29 : vector<8x128xf32>
    %31 = arith.mulf %30, %26 : vector<8x128xf32>
    %cst_14 = arith.constant 1.42141378 : f32
    %32 = vector.broadcast %cst_14 : f32 to vector<8x128xf32>
    %33 = arith.addf %31, %32 : vector<8x128xf32>
    %34 = arith.mulf %33, %26 : vector<8x128xf32>
    %cst_15 = arith.constant 0.284496725 : f32
    %35 = vector.broadcast %cst_15 : f32 to vector<8x128xf32>
    %36 = arith.subf %34, %35 : vector<8x128xf32>
    %37 = arith.mulf %36, %26 : vector<8x128xf32>
    %cst_16 = arith.constant 0.254829586 : f32
    %38 = vector.broadcast %cst_16 : f32 to vector<8x128xf32>
    %39 = arith.addf %37, %38 : vector<8x128xf32>
    %40 = arith.mulf %39, %26 : vector<8x128xf32>
    %cst_17 = arith.constant 0.000000e+00 : f32
    %41 = vector.broadcast %cst_17 : f32 to vector<8x128xf32>
    %42 = arith.subf %41, %20 : vector<8x128xf32>
    %43 = arith.mulf %42, %20 : vector<8x128xf32>
    %44 = math.exp %43 : vector<8x128xf32>
    %45 = arith.mulf %40, %44 : vector<8x128xf32>
    %cst_18 = arith.constant 1.000000e+00 : f32
    %46 = vector.broadcast %cst_18 : f32 to vector<8x128xf32>
    %47 = arith.subf %46, %45 : vector<8x128xf32>
    %cst_19 = arith.constant 0.000000e+00 : f32
    %48 = vector.broadcast %cst_19 : f32 to vector<8x128xf32>
    %49 = arith.cmpf oge, %19, %48 : vector<8x128xf32>
    %cst_20 = arith.constant 0.000000e+00 : f32
    %50 = vector.broadcast %cst_20 : f32 to vector<8x128xf32>
    %51 = arith.subf %50, %47 : vector<8x128xf32>
    %52 = arith.select %49, %47, %51 : vector<8x128xi1>, vector<8x128xf32>
    %cst_21 = arith.constant 1.000000e+00 : f32
    %53 = vector.broadcast %cst_21 : f32 to vector<8x128xf32>
    %54 = arith.addf %53, %52 : vector<8x128xf32>
    %55 = arith.mulf %17, %54 : vector<8x128xf32>
    %c0_22 = arith.constant 0 : index
    %c0_23 = arith.constant 0 : index
    %56 = vector.load %arg5[%c0_22, %c0_23] : memref<128x128xf32, #tpu.memory_space<vmem>>, vector<128x128xf32>
    %cst_24 = arith.constant dense<0.000000e+00> : vector<8x128xf32>
    %57 = tpu.matmul %55, %56, %cst_24 {dimension_numbers = #tpu.dot_dimension_numbers<[1], [0], [0], [1], [0, 0, 1, 1], [], []>} : vector<8x128xf32>, vector<128x128xf32>, vector<8x128xf32> -> vector<8x128xf32>
    %c0_25 = arith.constant 0 : index
    %c0_26 = arith.constant 0 : index
    %58 = vector.load %arg6[%c0_25, %c0_26] : memref<1x128xf32, #tpu.memory_space<vmem>>, vector<1x128xf32>
    %59 = vector.broadcast %58 : vector<1x128xf32> to vector<8x128xf32>
    %60 = arith.addf %57, %59 : vector<8x128xf32>
    %61 = vector.extract_strided_slice %60 {offsets = [0, 0], sizes = [8, 16], strides = [1, 1]} : vector<8x128xf32> to vector<8x16xf32>
    %c0_27 = arith.constant 0 : index
    %c0_28 = arith.constant 0 : index
    %62 = vector.load %arg7[%c0_27, %c0_28] : memref<8x16xf32, #tpu.memory_space<vmem>>, vector<8x16xf32>
    tpu.vector_store %arg7[%c0_27, %c0_28], %61 {strides = array<i32>} : memref<8x16xf32, #tpu.memory_space<vmem>>, vector<8x16xf32>,
    return
  }
  func.func @transform_0(%arg0: i32) -> (i32, i32) {
    %c0_i32 = arith.constant 0 : i32
    %c0_i32_0 = arith.constant 0 : i32
    return %arg0, %c0_i32 : i32, i32
  }
  func.func @transform_1(%arg0: i32) -> (i32, i32) {
    %c0_i32 = arith.constant 0 : i32
    %c0_i32_0 = arith.constant 0 : i32
    %c0_i32_1 = arith.constant 0 : i32
    return %c0_i32, %c0_i32_0 : i32, i32
  }
  func.func @transform_2(%arg0: i32) -> (i32, i32) {
    %c0_i32 = arith.constant 0 : i32
    %c0_i32_0 = arith.constant 0 : i32
    %c0_i32_1 = arith.constant 0 : i32
    return %c0_i32, %c0_i32_0 : i32, i32
  }
  func.func @transform_3(%arg0: i32) -> (i32, i32) {
    %c0_i32 = arith.constant 0 : i32
    %c0_i32_0 = arith.constant 0 : i32
    %c0_i32_1 = arith.constant 0 : i32
    return %c0_i32, %c0_i32_0 : i32, i32
  }
  func.func @transform_4(%arg0: i32) -> (i32, i32) {
    %c0_i32 = arith.constant 0 : i32
    %c0_i32_0 = arith.constant 0 : i32
    %c0_i32_1 = arith.constant 0 : i32
    return %c0_i32, %c0_i32_0 : i32, i32
  }
  func.func @transform_5(%arg0: i32) -> (i32, i32) {
    %c0_i32 = arith.constant 0 : i32
    %c0_i32_0 = arith.constant 0 : i32
    %c0_i32_1 = arith.constant 0 : i32
    return %c0_i32, %c0_i32_0 : i32, i32
  }
  func.func @transform_6(%arg0: i32) -> (i32, i32) {
    %c0_i32 = arith.constant 0 : i32
    %c0_i32_0 = arith.constant 0 : i32
    return %arg0, %c0_i32 : i32, i32
  }
}

</mosaic_0001>

<llo_original>
// kernel: tpu_custom_call.1
$region0: #{tpu_custom_call.1}
  #allocation0 [shape = 'u32[]', space=smem, size = 0x4, offset = 0x4, fixed_abs, tag = 'smem constant byte address 0x4 - core index']
  #allocation1 [shape = 'u32[144,128]{1,0:T(1,128)}', space=vmem, size = 0x12000, scoped, tag = 'internal scratch']
  %s0 = inlined_call_operand.vmem [shape: f32[8,1], index: 0, kind: input, shape index: {}]
  %s1 = inlined_call_operand.vmem [shape: f32[1,128], index: 1, kind: input, shape index: {}]
  %s2 = inlined_call_operand.hbm [shape: f32[128,128], index: 2, kind: input, shape index: {}]
  %s3 = inlined_call_operand.vmem [shape: f32[1,128], index: 3, kind: input, shape index: {}]
  %s4 = inlined_call_operand.hbm [shape: f32[128,128], index: 4, kind: input, shape index: {}]
  %s5 = inlined_call_operand.vmem [shape: f32[1,128], index: 5, kind: input, shape index: {}]
  %s6 = inlined_call_operand.hbm [shape: f32[8,16], index: 6, kind: output, shape index: {}]
  %s7 = sld [smem:[#allocation0]]
  $region42: #{tpu_custom_call.1} parent=0
    _
  %s9 = ssub.s32 1, %s7
  %s10 = scalar_select 0, %s9, %s7
  $region1: #{tpu_custom_call.1} parent=0
    #allocation2 [shape = 'u8[65536]{0}', space=vmem, size = 0x10000, scoped, tag = 'input window, operand 2, single buffered']
    #allocation3 [shape = 's32[1]{0}', space=sflag, size = 0x4, scoped, tag = 'scoped memory for tpu_custom_call.1']
    #allocation4 [shape = 's32[1]{0}', space=sflag, size = 0x4, scoped, tag = 'scoped memory for tpu_custom_call.1']
    #allocation5 [shape = 'u8[65536]{0}', space=vmem, size = 0x10000, scoped, tag = 'input window, operand 4, single buffered']
    #allocation6 [shape = 's32[1]{0}', space=sflag, size = 0x4, scoped, tag = 'scoped memory for tpu_custom_call.1']
    #allocation7 [shape = 'u8[4096]{0}', space=vmem, size = 0x1000, scoped, tag = 'output window, operand 0, single buffered']
    %11 = vsyncpa [#allocation3], 0
    %12 = vsyncpa [#allocation6], 0
    %13 = vsyncpa [#allocation4], 0
    // Predicated region
    $region2: #{tpu_custom_call.1} parent=1 // pred_check
      _
    $region3: #{tpu_custom_call.1} parent=1 // pred_check_branch
      %15 = sbr.rel (0) target = $region5
    $region4: #{tpu_custom_call.1} parent=1 // pred_region
      _
    $region5: #{tpu_custom_call.1} parent=1 // pred_fallthru
      _
    // Predicated region
    $region6: #{tpu_custom_call.1} parent=1 // pred_check
      _
    $region7: #{tpu_custom_call.1} parent=1 // pred_check_branch
      %17 = sbr.rel (0) target = $region9
    $region8: #{tpu_custom_call.1} parent=1 // pred_region
      _
    $region9: #{tpu_custom_call.1} parent=1 // pred_fallthru
      _
    // Predicated region
    $region10: #{tpu_custom_call.1} parent=1 // pred_check
      _
    $region11: #{tpu_custom_call.1} parent=1 // pred_check_branch
      %19 = sbr.rel (0) target = $region13
    $region12: #{tpu_custom_call.1} parent=1 // pred_region
      %s21 = ssub.s32 2048, 2048
      %22 = vsyncadd [#allocation3], %s21
      %s23 = sshll.u32 [#allocation2], 4
      %s24 = int_to_ptr.vmem [resolvable:$true] %s23
      %29 = dma.hbm_to_vmem [thread:$0]  %s2, 2048, %s24, [#allocation3], 128, 128, 8
    $region13: #{tpu_custom_call.1} parent=1 // pred_fallthru
      _
    // Predicated region
    $region14: #{tpu_custom_call.1} parent=1 // pred_check
      _
    $region15: #{tpu_custom_call.1} parent=1 // pred_check_branch
      %31 = sbr.rel (0) target = $region17
    $region16: #{tpu_custom_call.1} parent=1 // pred_region
      _
    $region17: #{tpu_custom_call.1} parent=1 // pred_fallthru
      _
    // Predicated region
    $region18: #{tpu_custom_call.1} parent=1 // pred_check
      _
    $region19: #{tpu_custom_call.1} parent=1 // pred_check_branch
      %33 = sbr.rel (0) target = $region21
    $region20: #{tpu_custom_call.1} parent=1 // pred_region
      %s35 = ssub.s32 2048, 2048
      %36 = vsyncadd [#allocation6], %s35
      %s37 = sshll.u32 [#allocation5], 4
      %s38 = int_to_ptr.vmem [resolvable:$true] %s37
      %43 = dma.hbm_to_vmem [thread:$0]  %s4, 2048, %s38, [#allocation6], 128, 128, 8
    $region21: #{tpu_custom_call.1} parent=1 // pred_fallthru
      _
    // Predicated region
    $region22: #{tpu_custom_call.1} parent=1 // pred_check
      _
    $region23: #{tpu_custom_call.1} parent=1 // pred_check_branch
      %45 = sbr.rel (0) target = $region25
    $region24: #{tpu_custom_call.1} parent=1 // pred_region
      _
    $region25: #{tpu_custom_call.1} parent=1 // pred_fallthru
      _
    // Predicated region
    $region26: #{tpu_custom_call.1} parent=1 // pred_check
      _
    $region27: #{tpu_custom_call.1} parent=1 // pred_check_branch
      %47 = sbr.rel (0) target = $region29
    $region28: #{tpu_custom_call.1} parent=1 // pred_region
      %48 = dma.done [#allocation3], 2048
    $region29: #{tpu_custom_call.1} parent=1 // pred_fallthru
      _
    // Predicated region
    $region30: #{tpu_custom_call.1} parent=1 // pred_check
      _
    $region31: #{tpu_custom_call.1} parent=1 // pred_check_branch
      %50 = sbr.rel (0) target = $region33
    $region32: #{tpu_custom_call.1} parent=1 // pred_region
      %51 = dma.done [#allocation6], 2048
    $region33: #{tpu_custom_call.1} parent=1 // pred_fallthru
      _
    %v52 = vld [vmem:[%s0] sm:$0xff]
    %v53 = vld [vmem:[%s1] sm:$0x1]
    %55 = vset.pattern.permute.xlu0 0
    %56 = vperm.xlu0 %55, %v52
    %v57 = vpop.permute.xlu0 %56
    %v60 = vlaneseq
    %v61 = vshrl.u32 %v60, 7
    %v62 = vsub.s32 0, %v61
    %v63 = vrot.slane %v53, %v62
    %v65 = vmul.f32 %v57, %v63
    %v66 = vlaneseq
    %v67 = vand.u32 %v66, 127
    %vm68 = vcmp.lt.s32.totalorder %v67, 8
    %v69 = vand.u32 2147483647, %v65
    %vm70 = vcmp.le.f32.partialorder %v69, 0.7853982
    %vm71 = vcmp.lt.s32.totalorder %v65, 0
    %v72 = vand.u32 %v65, 2139095040
    %v73 = vshrl.u32 %v72, 23
    %v74 = vsub.s32 %v73, 127
    %v75 = vand.u32 2147483647, %v65
    %v76 = vand.u32 %v75, 8388607
    %v77 = vor.u32 %v76, 8388608
    %v78 = vsub.s32 0, %v77
    %v79 = vadd.s32 %v74, 1
    %vm80 = vcmp.gt.s32.totalorder %v79, 0
    %v81 = vsel %vm80, %v79, 0
    %v82 = vshrl.u32 %v81, 5
    %v83 = vand.u32 %v81, 31
    %v84 = vsub.s32 32, %v83
    %v85 = vshrl.u32 683565275, %v84
    %v86 = vshll.u32 683565275, %v83
    %v87 = vshrl.u32 2475754826, %v84
    %v88 = vor.u32 %v86, %v87
    %v89 = vshll.u32 2475754826, %v83
    %v90 = vshrl.u32 2131351028, %v84
    %v91 = vor.u32 %v89, %v90
    %v92 = vshll.u32 2131351028, %v83
    %v93 = vshrl.u32 2102212464, %v84
    %v94 = vor.u32 %v92, %v93
    %v95 = vshll.u32 2102212464, %v83
    %v96 = vshrl.u32 920167782, %v84
    %v97 = vor.u32 %v95, %v96
    %v98 = vshll.u32 920167782, %v83
    %v99 = vshrl.u32 1326507024, %v84
    %v100 = vor.u32 %v98, %v99
    %vm101 = vcmp.lt.s32.totalorder %v82, 1
    %vm102 = vcmp.lt.s32.totalorder %v82, 2
    %vm103 = vcmp.lt.s32.totalorder %v82, 3
    %vm104 = vcmp.lt.s32.totalorder %v82, 4
    %v105 = vsel %vm101, %v85, %v88
    %v106 = vsel %vm104, %v94, 2102212464
    %v107 = vsel %vm103, %v91, %v106
    %v108 = vsel %vm102, %v105, %v107
    %v109 = vsel %vm101, %v88, %v91
    %v110 = vsel %vm104, %v97, 920167782
    %v111 = vsel %vm103, %v94, %v110
    %v112 = vsel %vm102, %v109, %v111
    %v113 = vsel %vm101, %v91, %v94
    %v114 = vsel %vm104, %v100, 1326507024
    %v115 = vsel %vm103, %v97, %v114
    %v116 = vsel %vm102, %v113, %v115
    %v117 = vshll.u32 %v77, 8
    %v118 = vmul.u32.u64.compose %v117, %v116
    %v119 = vextract.low.u32 %v118
    %v120 = vextract.high.u32 %v118
    %v121 = vmul.u32.u64.compose %v117, %v112
    %v122 = vextract.low.u32 %v121
    %v123 = vextract.high.u32 %v121
    %v124 = vmul.u32 %v117, %v108
    %v125 = vadd.s32 %v120, %v122
    %vm126 = vc.u32 %v120, %v122
    %v127 = vadd.s32 %v123, 1
    %v128 = vsel %vm126, %v127, %v123
    %v129 = vadd.s32 %v124, %v128
    %v130 = vadd.s32 %v129, 536870912
    %v131 = vshrl.u32 %v130, 30
    %v132 = vshll.u32 %v131, 30
    %v133 = vsub.s32 %v129, %v132
    %vm134 = vcmp.lt.s32.totalorder %v133, 0
    %v135 = vsub.s32 0, %v133
    %v136 = vsel %vm134, %v135, %v133
    %v137 = vclz %v136
    %v138 = vsub.s32 %v137, 2
    %vm139 = vcmp.gt.s32.totalorder 0, %v138
    %v140 = vsel %vm139, 0, %v138
    %v141 = vsub.s32 32, %v140
    %v142 = vshll.u32 %v133, %v140
    %v143 = vshrl.u32 %v125, %v141
    %v144 = vor.u32 %v142, %v143
    %v145 = vsub.s32 4294967266, %v140
    %v146 = vadd.s32 %v145, 127
    %v147 = vshll.u32 %v146, 23
    %v148 = vor.u32 4788187, %v147
    %v149 = vand.u32 2147483647, %v148
    %v151 = vcvt.s32.f32 %v144
    %v152 = vmul.f32 %v151, %v149
    %v153 = vxor.u32 %v152, 2147483648
    %v154 = vsel %vm71, %v153, %v152
    %v155 = vsub.s32 4, %v131
    %v156 = vsel %vm71, %v155, %v131
    %v157 = vsel %vm70, %v65, %v154
    %v158 = vsel %vm70, 0, %v156
    %v159 = vcosq.f32.pop %v157
    %v160 = vsinq.f32.pop %v157
    %vm161 = vweird.f32 %v65
    %v162 = vadd.s32 %v158, 3
    %v163 = vand.u32 %v162, 3
    %vm164 = vcmp.lt.s32.totalorder %v163, 2
    %vm165 = vcmp.eq.s32.totalorder %v163, 0
    %v166 = vxor.u32 %v160, 2147483648
    %v167 = vsel %vm165, %v159, %v166
    %vm168 = vcmp.eq.s32.totalorder %v163, 2
    %v169 = vxor.u32 %v159, 2147483648
    %v170 = vsel %vm168, %v169, %v160
    %v171 = vsel %vm164, %v167, %v170
    %v172 = vsel %vm161, nan, %v171
    %v173 = vand.u32 2147483647, %v65
    %vm174 = vcmp.le.f32.partialorder %v173, 0.7853982
    %vm175 = vcmp.lt.s32.totalorder %v65, 0
    %v176 = vand.u32 %v65, 2139095040
    %v177 = vshrl.u32 %v176, 23
    %v178 = vsub.s32 %v177, 127
    %v179 = vand.u32 2147483647, %v65
    %v180 = vand.u32 %v179, 8388607
    %v181 = vor.u32 %v180, 8388608
    %v182 = vsub.s32 0, %v181
    %v183 = vadd.s32 %v178, 1
    %vm184 = vcmp.gt.s32.totalorder %v183, 0
    %v185 = vsel %vm184, %v183, 0
    %v186 = vshrl.u32 %v185, 5
    %v187 = vand.u32 %v185, 31
    %v188 = vsub.s32 32, %v187
    %v189 = vshrl.u32 683565275, %v188
    %v190 = vshll.u32 683565275, %v187
    %v191 = vshrl.u32 2475754826, %v188
    %v192 = vor.u32 %v190, %v191
    %v193 = vshll.u32 2475754826, %v187
    %v194 = vshrl.u32 2131351028, %v188
    %v195 = vor.u32 %v193, %v194
    %v196 = vshll.u32 2131351028, %v187
    %v197 = vshrl.u32 2102212464, %v188
    %v198 = vor.u32 %v196, %v197
    %v199 = vshll.u32 2102212464, %v187
    %v200 = vshrl.u32 920167782, %v188
    %v201 = vor.u32 %v199, %v200
    %v202 = vshll.u32 920167782, %v187
    %v203 = vshrl.u32 1326507024, %v188
    %v204 = vor.u32 %v202, %v203
    %vm205 = vcmp.lt.s32.totalorder %v186, 1
    %vm206 = vcmp.lt.s32.totalorder %v186, 2
    %vm207 = vcmp.lt.s32.totalorder %v186, 3
    %vm208 = vcmp.lt.s32.totalorder %v186, 4
    %v209 = vsel %vm205, %v189, %v192
    %v210 = vsel %vm208, %v198, 2102212464
    %v211 = vsel %vm207, %v195, %v210
    %v212 = vsel %vm206, %v209, %v211
    %v213 = vsel %vm205, %v192, %v195
    %v214 = vsel %vm208, %v201, 920167782
    %v215 = vsel %vm207, %v198, %v214
    %v216 = vsel %vm206, %v213, %v215
    %v217 = vsel %vm205, %v195, %v198
    %v218 = vsel %vm208, %v204, 1326507024
    %v219 = vsel %vm207, %v201, %v218
    %v220 = vsel %vm206, %v217, %v219
    %v221 = vshll.u32 %v181, 8
    %v222 = vmul.u32.u64.compose %v221, %v220
    %v223 = vextract.low.u32 %v222
    %v224 = vextract.high.u32 %v222
    %v225 = vmul.u32.u64.compose %v221, %v216
    %v226 = vextract.low.u32 %v225
    %v227 = vextract.high.u32 %v225
    %v228 = vmul.u32 %v221, %v212
    %v229 = vadd.s32 %v224, %v226
    %vm230 = vc.u32 %v224, %v226
    %v231 = vadd.s32 %v227, 1
    %v232 = vsel %vm230, %v231, %v227
    %v233 = vadd.s32 %v228, %v232
    %v234 = vadd.s32 %v233, 536870912
    %v235 = vshrl.u32 %v234, 30
    %v236 = vshll.u32 %v235, 30
    %v237 = vsub.s32 %v233, %v236
    %vm238 = vcmp.lt.s32.totalorder %v237, 0
    %v239 = vsub.s32 0, %v237
    %v240 = vsel %vm238, %v239, %v237
    %v241 = vclz %v240
    %v242 = vsub.s32 %v241, 2
    %vm243 = vcmp.gt.s32.totalorder 0, %v242
    %v244 = vsel %vm243, 0, %v242
    %v245 = vsub.s32 32, %v244
    %v246 = vshll.u32 %v237, %v244
    %v247 = vshrl.u32 %v229, %v245
    %v248 = vor.u32 %v246, %v247
    %v249 = vsub.s32 4294967266, %v244
    %v250 = vadd.s32 %v249, 127
    %v251 = vshll.u32 %v250, 23
    %v252 = vor.u32 4788187, %v251
    %v253 = vand.u32 2147483647, %v252
    %v255 = vcvt.s32.f32 %v248
    %v256 = vmul.f32 %v255, %v253
    %v257 = vxor.u32 %v256, 2147483648
    %v258 = vsel %vm175, %v257, %v256
    %v259 = vsub.s32 4, %v235
    %v260 = vsel %vm175, %v259, %v235
    %v261 = vsel %vm174, %v65, %v258
    %v262 = vsel %vm174, 0, %v260
    %v263 = vcosq.f32.pop %v261
    %v264 = vsinq.f32.pop %v261
    %vm265 = vweird.f32 %v65
    %v266 = vand.u32 %v262, 3
    %vm267 = vcmp.lt.s32.totalorder %v266, 2
    %vm268 = vcmp.eq.s32.totalorder %v266, 0
    %v269 = vxor.u32 %v264, 2147483648
    %v270 = vsel %vm268, %v263, %v269
    %vm271 = vcmp.eq.s32.totalorder %v266, 2
    %v272 = vxor.u32 %v263, 2147483648
    %v273 = vsel %vm271, %v272, %v264
    %v274 = vsel %vm267, %v270, %v273
    %v275 = vsel %vm265, nan, %v274
    %v276 = vsel %vm68, %v172, %v275
    %v277 = vld [vmem:[#allocation2] sm:$0xff]
    %v278 = vld [vmem:[#allocation2 + $0x8] sm:$0xff]
    %v279 = vld [vmem:[#allocation2 + $0x10] sm:$0xff]
    %v280 = vld [vmem:[#allocation2 + $0x18] sm:$0xff]
    %v281 = vld [vmem:[#allocation2 + $0x20] sm:$0xff]
    %v282 = vld [vmem:[#allocation2 + $0x28] sm:$0xff]
    %v283 = vld [vmem:[#allocation2 + $0x30] sm:$0xff]
    %v284 = vld [vmem:[#allocation2 + $0x38] sm:$0xff]
    %v285 = vld [vmem:[#allocation2 + $0x40] sm:$0xff]
    %v286 = vld [vmem:[#allocation2 + $0x48] sm:$0xff]
    %v287 = vld [vmem:[#allocation2 + $0x50] sm:$0xff]
    %v288 = vld [vmem:[#allocation2 + $0x58] sm:$0xff]
    %v289 = vld [vmem:[#allocation2 + $0x60] sm:$0xff]
    %v290 = vld [vmem:[#allocation2 + $0x68] sm:$0xff]
    %v291 = vld [vmem:[#allocation2 + $0x70] sm:$0xff]
    %v292 = vld [vmem:[#allocation2 + $0x78] sm:$0xff]
    %v293 = vld [vmem:[%s3] sm:$0x1]
    %v295 = vlaneseq
    %v296 = vshrl.u32 %v295, 7
    %v297 = vsub.s32 0, %v296
    %v298 = vrot.slane %v293, %v297
    %300 = vmatprep.subr.mxu0 0.0
    %301 = vmatpush1.msra.mxu0 %v277
    %302 = vmatprep.subr.mxu0 0.0
    %303 = vmatpush1.msra.mxu0 %v278
    %304 = vmatprep.subr.mxu0 0.0
    %305 = vmatpush1.msra.mxu0 %v279
    %306 = vmatprep.subr.mxu0 0.0
    %307 = vmatpush1.msra.mxu0 %v280
    %308 = vmatprep.subr.mxu0 0.0
    %309 = vmatpush1.msra.mxu0 %v281
    %310 = vmatprep.subr.mxu0 0.0
    %311 = vmatpush1.msra.mxu0 %v282
    %312 = vmatprep.subr.mxu0 0.0
    %313 = vmatpush1.msra.mxu0 %v283
    %314 = vmatprep.subr.mxu0 0.0
    %315 = vmatpush1.msra.mxu0 %v284
    %316 = vmatprep.subr.mxu0 0.0
    %317 = vmatpush1.msra.mxu0 %v285
    %318 = vmatprep.subr.mxu0 0.0
    %319 = vmatpush1.msra.mxu0 %v286
    %320 = vmatprep.subr.mxu0 0.0
    %321 = vmatpush1.msra.mxu0 %v287
    %322 = vmatprep.subr.mxu0 0.0
    %323 = vmatpush1.msra.mxu0 %v288
    %324 = vmatprep.subr.mxu0 0.0
    %325 = vmatpush1.msra.mxu0 %v289
    %326 = vmatprep.subr.mxu0 0.0
    %327 = vmatpush1.msra.mxu0 %v290
    %328 = vmatprep.subr.mxu0 0.0
    %329 = vmatpush1.msra.mxu0 %v291
    %330 = vmatprep.subr.mxu0 0.0
    %331 = vmatpush1.msra.mxu0 %v292
    %332 = vmatprep.subr.mxu0 0.0
    %333 = vmatpush1.msra.mxu0 0.0
    %334 = vmatprep.subr.mxu0 0.0
    %335 = vmatpush1.msra.mxu0 0.0
    %336 = vmatprep.subr.mxu0 0.0
    %337 = vmatpush1.msra.mxu0 0.0
    %338 = vmatprep.subr.mxu0 0.0
    %339 = vmatpush1.msra.mxu0 0.0
    %340 = vmatprep.subr.mxu0 0.0
    %341 = vmatpush1.msra.mxu0 0.0
    %342 = vmatprep.subr.mxu0 0.0
    %343 = vmatpush1.msra.mxu0 0.0
    %344 = vmatprep.subr.mxu0 0.0
    %345 = vmatpush1.msra.mxu0 0.0
    %346 = vmatprep.subr.mxu0 0.0
    %347 = vmatpush1.msra.mxu0 0.0
    %348 = vmatprep.subr.mxu0 0.0
    %349 = vmatpush1.msra.mxu0 0.0
    %350 = vmatprep.subr.mxu0 0.0
    %351 = vmatpush1.msra.mxu0 0.0
    %352 = vmatprep.subr.mxu0 0.0
    %353 = vmatpush1.msra.mxu0 0.0
    %354 = vmatprep.subr.mxu0 0.0
    %355 = vmatpush1.msra.mxu0 0.0
    %356 = vmatprep.subr.mxu0 0.0
    %357 = vmatpush1.msra.mxu0 0.0
    %358 = vmatprep.subr.mxu0 0.0
    %359 = vmatpush1.msra.mxu0 0.0
    %360 = vmatprep.subr.mxu0 0.0
    %361 = vmatpush1.msra.mxu0 0.0
    %362 = vmatprep.subr.mxu0 0.0
    %363 = vmatpush1.msra.mxu0 0.0
    %364 = vmatprep.mubr.f32.mxu0 0.0
    %365 = vmatmul.mubr.f32.gmra.mrb[0].mxu0 %v276
    %v366 = vpop.f32.mrb[0].mxu0
    %v367 = vadd.f32 %v298, %v366
    %v368 = vpop.f32.mrb[0].mxu0
    %369 = vdwg.mxu0
    %v370 = vmul.f32 %v367, 0.5
    %v371 = vmul.f32 %v367, 0.70710677
    %v372 = vand.u32 2147483647, %v371
    %v373 = vmul.f32 %v372, 0.3275911
    %v374 = vadd.f32 %v373, 1.0
    %v375 = vrcp.pop %v374
    %v376 = vmul.f32 1.0, %v375
    %v377 = vmul.f32 %v376, 1.0614054
    %v378 = vsub.f32 %v377, 1.4531521
    %v379 = vmul.f32 %v378, %v376
    %v380 = vadd.f32 %v379, 1.4214138
    %v381 = vmul.f32 %v380, %v376
    %v382 = vsub.f32 %v381, 0.28449672
    %v383 = vmul.f32 %v382, %v376
    %v384 = vadd.f32 %v383, 0.2548296
    %v385 = vmul.f32 %v384, %v376
    %v386 = vsub.f32 0.0, %v372
    %v387 = vmul.f32 %v386, %v372
    %v388 = vmul.f32 %v387, 1.442695
    %v389 = vpow.pop %v388
    %v390 = vmul.f32 %v385, %v389
    %v391 = vsub.f32 1.0, %v390
    %vm392 = vcmp.ge.f32.partialorder %v371, 0.0
    %v393 = vsub.f32 0.0, %v391
    %v394 = vsel %vm392, %v391, %v393
    %v395 = vadd.f32 %v394, 1.0
    %v396 = vmul.f32 %v370, %v395
    %v397 = vld [vmem:[#allocation5] sm:$0xff]
    %v398 = vld [vmem:[#allocation5 + $0x8] sm:$0xff]
    %v399 = vld [vmem:[#allocation5 + $0x10] sm:$0xff]
    %v400 = vld [vmem:[#allocation5 + $0x18] sm:$0xff]
    %v401 = vld [vmem:[#allocation5 + $0x20] sm:$0xff]
    %v402 = vld [vmem:[#allocation5 + $0x28] sm:$0xff]
    %v403 = vld [vmem:[#allocation5 + $0x30] sm:$0xff]
    %v404 = vld [vmem:[#allocation5 + $0x38] sm:$0xff]
    %v405 = vld [vmem:[#allocation5 + $0x40] sm:$0xff]
    %v406 = vld [vmem:[#allocation5 + $0x48] sm:$0xff]
    %v407 = vld [vmem:[#allocation5 + $0x50] sm:$0xff]
    %v408 = vld [vmem:[#allocation5 + $0x58] sm:$0xff]
    %v409 = vld [vmem:[#allocation5 + $0x60] sm:$0xff]
    %v410 = vld [vmem:[#allocation5 + $0x68] sm:$0xff]
    %v411 = vld [vmem:[#allocation5 + $0x70] sm:$0xff]
    %v412 = vld [vmem:[#allocation5 + $0x78] sm:$0xff]
    %v413 = vld [vmem:[%s5] sm:$0x1]
    %v415 = vlaneseq
    %v416 = vshrl.u32 %v415, 7
    %v417 = vsub.s32 0, %v416
    %v418 = vrot.slane %v413, %v417
    %420 = vmatprep.subr.mxu0 0.0
    %421 = vmatpush1.msra.mxu0 %v397
    %422 = vmatprep.subr.mxu0 0.0
    %423 = vmatpush1.msra.mxu0 %v398
    %424 = vmatprep.subr.mxu0 0.0
    %425 = vmatpush1.msra.mxu0 %v399
    %426 = vmatprep.subr.mxu0 0.0
    %427 = vmatpush1.msra.mxu0 %v400
    %428 = vmatprep.subr.mxu0 0.0
    %429 = vmatpush1.msra.mxu0 %v401
    %430 = vmatprep.subr.mxu0 0.0
    %431 = vmatpush1.msra.mxu0 %v402
    %432 = vmatprep.subr.mxu0 0.0
    %433 = vmatpush1.msra.mxu0 %v403
    %434 = vmatprep.subr.mxu0 0.0
    %435 = vmatpush1.msra.mxu0 %v404
    %436 = vmatprep.subr.mxu0 0.0
    %437 = vmatpush1.msra.mxu0 %v405
    %438 = vmatprep.subr.mxu0 0.0
    %439 = vmatpush1.msra.mxu0 %v406
    %440 = vmatprep.subr.mxu0 0.0
    %441 = vmatpush1.msra.mxu0 %v407
    %442 = vmatprep.subr.mxu0 0.0
    %443 = vmatpush1.msra.mxu0 %v408
    %444 = vmatprep.subr.mxu0 0.0
    %445 = vmatpush1.msra.mxu0 %v409
    %446 = vmatprep.subr.mxu0 0.0
    %447 = vmatpush1.msra.mxu0 %v410
    %448 = vmatprep.subr.mxu0 0.0
    %449 = vmatpush1.msra.mxu0 %v411
    %450 = vmatprep.subr.mxu0 0.0
    %451 = vmatpush1.msra.mxu0 %v412
    %452 = vmatprep.subr.mxu0 0.0
    %453 = vmatpush1.msra.mxu0 0.0
    %454 = vmatprep.subr.mxu0 0.0
    %455 = vmatpush1.msra.mxu0 0.0
    %456 = vmatprep.subr.mxu0 0.0
    %457 = vmatpush1.msra.mxu0 0.0
    %458 = vmatprep.subr.mxu0 0.0
    %459 = vmatpush1.msra.mxu0 0.0
    %460 = vmatprep.subr.mxu0 0.0
    %461 = vmatpush1.msra.mxu0 0.0
    %462 = vmatprep.subr.mxu0 0.0
    %463 = vmatpush1.msra.mxu0 0.0
    %464 = vmatprep.subr.mxu0 0.0
    %465 = vmatpush1.msra.mxu0 0.0
    %466 = vmatprep.subr.mxu0 0.0
    %467 = vmatpush1.msra.mxu0 0.0
    %468 = vmatprep.subr.mxu0 0.0
    %469 = vmatpush1.msra.mxu0 0.0
    %470 = vmatprep.subr.mxu0 0.0
    %471 = vmatpush1.msra.mxu0 0.0
    %472 = vmatprep.subr.mxu0 0.0
    %473 = vmatpush1.msra.mxu0 0.0
    %474 = vmatprep.subr.mxu0 0.0
    %475 = vmatpush1.msra.mxu0 0.0
    %476 = vmatprep.subr.mxu0 0.0
    %477 = vmatpush1.msra.mxu0 0.0
    %478 = vmatprep.subr.mxu0 0.0
    %479 = vmatpush1.msra.mxu0 0.0
    %480 = vmatprep.subr.mxu0 0.0
    %481 = vmatpush1.msra.mxu0 0.0
    %482 = vmatprep.subr.mxu0 0.0
    %483 = vmatpush1.msra.mxu0 0.0
    %484 = vmatprep.mubr.f32.mxu0 0.0
    %485 = vmatmul.mubr.f32.gmra.mrb[0].mxu0 %v396
    %v486 = vpop.f32.mrb[0].mxu0
    %v487 = vadd.f32 %v418, %v486
    %v488 = vpop.f32.mrb[0].mxu0
    %489 = vdwg.mxu0
    %vm490 = vcmask 130048
    %491 = vst.msk [vmem:[#allocation7] sm:$0xff] %vm490, %v487
    // Predicated region
    $region34: #{tpu_custom_call.1} parent=1 // pred_check
      _
    $region35: #{tpu_custom_call.1} parent=1 // pred_check_branch
      %493 = sbr.rel (0) target = $region37
    $region36: #{tpu_custom_call.1} parent=1 // pred_region
      %s495 = ssub.s32 128, 128
      %496 = vsyncadd [#allocation4], %s495
      %s498 = sshll.u32 [#allocation7], 4
      %s499 = int_to_ptr.vmem [resolvable:$true] %s498
      %501 = dma.vmem_to_hbm [thread:$0]  %s499, 128, %s6, [#allocation4]
    $region37: #{tpu_custom_call.1} parent=1 // pred_fallthru
      _
    // Predicated region
    $region38: #{tpu_custom_call.1} parent=1 // pred_check
      _
    $region39: #{tpu_custom_call.1} parent=1 // pred_check_branch
      %503 = sbr.rel (0) target = $region41
    $region40: #{tpu_custom_call.1} parent=1 // pred_region
      %504 = dma.done [#allocation4], 128
    $region41: #{tpu_custom_call.1} parent=1 // pred_fallthru
      _
    %505 = vsyncpa [#allocation3], 1
    %506 = vsyncpa [#allocation6], 1
    %507 = vsyncpa [#allocation4], 1

// kernel: tpu_custom_call.1
$region0: #{tpu_custom_call.1}
  #allocation0 [shape = 'u32[]', space=smem, size = 0x4, offset = 0x4, fixed_abs, tag = 'smem constant byte address 0x4 - core index']
  #allocation1 [shape = 'u32[144,128]{1,0:T(1,128)}', space=vmem, size = 0x12000, scoped, tag = 'internal scratch']
  %s0 = inlined_call_operand.vmem [shape: f32[8,1], index: 0, kind: input, shape index: {}]
  %s1 = inlined_call_operand.vmem [shape: f32[1,128], index: 1, kind: input, shape index: {}]
  %s2 = inlined_call_operand.hbm [shape: f32[128,128], index: 2, kind: input, shape index: {}]
  %s3 = inlined_call_operand.vmem [shape: f32[1,128], index: 3, kind: input, shape index: {}]
  %s4 = inlined_call_operand.hbm [shape: f32[128,128], index: 4, kind: input, shape index: {}]
  %s5 = inlined_call_operand.vmem [shape: f32[1,128], index: 5, kind: input, shape index: {}]
  %s6 = inlined_call_operand.hbm [shape: f32[8,16], index: 6, kind: output, shape index: {}]
  %s7 = sld [smem:[#allocation0]]
  $region42: #{tpu_custom_call.1} parent=0
    _
  %s9 = ssub.s32 1, %s7
  %s10 = scalar_select 0, %s9, %s7
  $region1: #{tpu_custom_call.1} parent=0
    #allocation2 [shape = 'u8[65536]{0}', space=vmem, size = 0x10000, scoped, tag = 'input window, operand 2, single buffered']
    #allocation3 [shape = 's32[1]{0}', space=sflag, size = 0x4, scoped, tag = 'scoped memory for tpu_custom_call.1']
    #allocation4 [shape = 's32[1]{0}', space=sflag, size = 0x4, scoped, tag = 'scoped memory for tpu_custom_call.1']
    #allocation5 [shape = 'u8[65536]{0}', space=vmem, size = 0x10000, scoped, tag = 'input window, operand 4, single buffered']
    #allocation6 [shape = 's32[1]{0}', space=sflag, size = 0x4, scoped, tag = 'scoped memory for tpu_custom_call.1']
    #allocation7 [shape = 'u8[4096]{0}', space=vmem, size = 0x1000, scoped, tag = 'output window, operand 0, single buffered']
    %11 = vsyncpa [#allocation3], 0
    %12 = vsyncpa [#allocation6], 0
    %13 = vsyncpa [#allocation4], 0
    // Predicated region
    $region2: #{tpu_custom_call.1} parent=1 // pred_check
      _
    $region3: #{tpu_custom_call.1} parent=1 // pred_check_branch
      %15 = sbr.rel (0) target = $region5
    $region4: #{tpu_custom_call.1} parent=1 // pred_region
      _
    $region5: #{tpu_custom_call.1} parent=1 // pred_fallthru
      _
    // Predicated region
    $region6: #{tpu_custom_call.1} parent=1 // pred_check
      _
    $region7: #{tpu_custom_call.1} parent=1 // pred_check_branch
      %17 = sbr.rel (0) target = $region9
    $region8: #{tpu_custom_call.1} parent=1 // pred_region
      _
    $region9: #{tpu_custom_call.1} parent=1 // pred_fallthru
      _
    // Predicated region
    $region10: #{tpu_custom_call.1} parent=1 // pred_check
      _
    $region11: #{tpu_custom_call.1} parent=1 // pred_check_branch
      %19 = sbr.rel (0) target = $region13
    $region12: #{tpu_custom_call.1} parent=1 // pred_region
      %s21 = ssub.s32 2048, 2048
      %22 = vsyncadd [#allocation3], %s21
      %s23 = sshll.u32 [#allocation2], 4
      %s24 = int_to_ptr.vmem [resolvable:$true] %s23
      %29 = dma.hbm_to_vmem [thread:$0]  %s2, 2048, %s24, [#allocation3], 128, 128, 8
    $region13: #{tpu_custom_call.1} parent=1 // pred_fallthru
      _
    // Predicated region
    $region14: #{tpu_custom_call.1} parent=1 // pred_check
      _
    $region15: #{tpu_custom_call.1} parent=1 // pred_check_branch
      %31 = sbr.rel (0) target = $region17
    $region16: #{tpu_custom_call.1} parent=1 // pred_region
      _
    $region17: #{tpu_custom_call.1} parent=1 // pred_fallthru
      _
    // Predicated region
    $region18: #{tpu_custom_call.1} parent=1 // pred_check
      _
    $region19: #{tpu_custom_call.1} parent=1 // pred_check_branch
      %33 = sbr.rel (0) target = $region21
    $region20: #{tpu_custom_call.1} parent=1 // pred_region
      %s35 = ssub.s32 2048, 2048
      %36 = vsyncadd [#allocation6], %s35
      %s37 = sshll.u32 [#allocation5], 4
      %s38 = int_to_ptr.vmem [resolvable:$true] %s37
      %43 = dma.hbm_to_vmem [thread:$0]  %s4, 2048, %s38, [#allocation6], 128, 128, 8
    $region21: #{tpu_custom_call.1} parent=1 // pred_fallthru
      _
    // Predicated region
    $region22: #{tpu_custom_call.1} parent=1 // pred_check
      _
    $region23: #{tpu_custom_call.1} parent=1 // pred_check_branch
      %45 = sbr.rel (0) target = $region25
    $region24: #{tpu_custom_call.1} parent=1 // pred_region
      _
    $region25: #{tpu_custom_call.1} parent=1 // pred_fallthru
      _
    // Predicated region
    $region26: #{tpu_custom_call.1} parent=1 // pred_check
      _
    $region27: #{tpu_custom_call.1} parent=1 // pred_check_branch
      %47 = sbr.rel (0) target = $region29
    $region28: #{tpu_custom_call.1} parent=1 // pred_region
      %48 = dma.done [#allocation3], 2048
    $region29: #{tpu_custom_call.1} parent=1 // pred_fallthru
      _
    // Predicated region
    $region30: #{tpu_custom_call.1} parent=1 // pred_check
      _
    $region31: #{tpu_custom_call.1} parent=1 // pred_check_branch
      %50 = sbr.rel (0) target = $region33
    $region32: #{tpu_custom_call.1} parent=1 // pred_region
      %51 = dma.done [#allocation6], 2048
    $region33: #{tpu_custom_call.1} parent=1 // pred_fallthru
      _
    %v52 = vld [vmem:[%s0] sm:$0xff]
    %v53 = vld [vmem:[%s1] sm:$0x1]
    %55 = vset.pattern.permute.xlu0 0
    %56 = vperm.xlu0 %55, %v52
    %v57 = vpop.permute.xlu0 %56
    %v60 = vlaneseq
    %v61 = vshrl.u32 %v60, 7
    %v62 = vsub.s32 0, %v61
    %v63 = vrot.slane %v53, %v62
    %v65 = vmul.f32 %v57, %v63
    %v66 = vlaneseq
    %v67 = vand.u32 %v66, 127
    %vm68 = vcmp.lt.s32.totalorder %v67, 8
    %v69 = vand.u32 2147483647, %v65
    %vm70 = vcmp.le.f32.partialorder %v69, 0.7853982
    %vm71 = vcmp.lt.s32.totalorder %v65, 0
    %v72 = vand.u32 %v65, 2139095040
    %v73 = vshrl.u32 %v72, 23
    %v74 = vsub.s32 %v73, 127
    %v75 = vand.u32 2147483647, %v65
    %v76 = vand.u32 %v75, 8388607
    %v77 = vor.u32 %v76, 8388608
    %v78 = vsub.s32 0, %v77
    %v79 = vadd.s32 %v74, 1
    %vm80 = vcmp.gt.s32.totalorder %v79, 0
    %v81 = vsel %vm80, %v79, 0
    %v82 = vshrl.u32 %v81, 5
    %v83 = vand.u32 %v81, 31
    %v84 = vsub.s32 32, %v83
    %v85 = vshrl.u32 683565275, %v84
    %v86 = vshll.u32 683565275, %v83
    %v87 = vshrl.u32 2475754826, %v84
    %v88 = vor.u32 %v86, %v87
    %v89 = vshll.u32 2475754826, %v83
    %v90 = vshrl.u32 2131351028, %v84
    %v91 = vor.u32 %v89, %v90
    %v92 = vshll.u32 2131351028, %v83
    %v93 = vshrl.u32 2102212464, %v84
    %v94 = vor.u32 %v92, %v93
    %v95 = vshll.u32 2102212464, %v83
    %v96 = vshrl.u32 920167782, %v84
    %v97 = vor.u32 %v95, %v96
    %v98 = vshll.u32 920167782, %v83
    %v99 = vshrl.u32 1326507024, %v84
    %v100 = vor.u32 %v98, %v99
    %vm101 = vcmp.lt.s32.totalorder %v82, 1
    %vm102 = vcmp.lt.s32.totalorder %v82, 2
    %vm103 = vcmp.lt.s32.totalorder %v82, 3
    %vm104 = vcmp.lt.s32.totalorder %v82, 4
    %v105 = vsel %vm101, %v85, %v88
    %v106 = vsel %vm104, %v94, 2102212464
    %v107 = vsel %vm103, %v91, %v106
    %v108 = vsel %vm102, %v105, %v107
    %v109 = vsel %vm101, %v88, %v91
    %v110 = vsel %vm104, %v97, 920167782
    %v111 = vsel %vm103, %v94, %v110
    %v112 = vsel %vm102, %v109, %v111
    %v113 = vsel %vm101, %v91, %v94
    %v114 = vsel %vm104, %v100, 1326507024
    %v115 = vsel %vm103, %v97, %v114
    %v116 = vsel %vm102, %v113, %v115
    %v117 = vshll.u32 %v77, 8
    %v118 = vmul.u32.u64.compose %v117, %v116
    %v119 = vextract.low.u32 %v118
    %v120 = vextract.high.u32 %v118
    %v121 = vmul.u32.u64.compose %v117, %v112
    %v122 = vextract.low.u32 %v121
    %v123 = vextract.high.u32 %v121
    %v124 = vmul.u32 %v117, %v108
    %v125 = vadd.s32 %v120, %v122
    %vm126 = vc.u32 %v120, %v122
    %v127 = vadd.s32 %v123, 1
    %v128 = vsel %vm126, %v127, %v123
    %v129 = vadd.s32 %v124, %v128
    %v130 = vadd.s32 %v129, 536870912
    %v131 = vshrl.u32 %v130, 30
    %v132 = vshll.u32 %v131, 30
    %v133 = vsub.s32 %v129, %v132
    %vm134 = vcmp.lt.s32.totalorder %v133, 0
    %v135 = vsub.s32 0, %v133
    %v136 = vsel %vm134, %v135, %v133
    %v137 = vclz %v136
    %v138 = vsub.s32 %v137, 2
    %vm139 = vcmp.gt.s32.totalorder 0, %v138
    %v140 = vsel %vm139, 0, %v138
    %v141 = vsub.s32 32, %v140
    %v142 = vshll.u32 %v133, %v140
    %v143 = vshrl.u32 %v125, %v141
    %v144 = vor.u32 %v142, %v143
    %v145 = vsub.s32 4294967266, %v140
    %v146 = vadd.s32 %v145, 127
    %v147 = vshll.u32 %v146, 23
    %v148 = vor.u32 4788187, %v147
    %v149 = vand.u32 2147483647, %v148
    %v151 = vcvt.s32.f32 %v144
    %v152 = vmul.f32 %v151, %v149
    %v153 = vxor.u32 %v152, 2147483648
    %v154 = vsel %vm71, %v153, %v152
    %v155 = vsub.s32 4, %v131
    %v156 = vsel %vm71, %v155, %v131
    %v157 = vsel %vm70, %v65, %v154
    %v158 = vsel %vm70, 0, %v156
    %v159 = vcosq.f32.pop %v157
    %v160 = vsinq.f32.pop %v157
    %vm161 = vweird.f32 %v65
    %v162 = vadd.s32 %v158, 3
    %v163 = vand.u32 %v162, 3
    %vm164 = vcmp.lt.s32.totalorder %v163, 2
    %vm165 = vcmp.eq.s32.totalorder %v163, 0
    %v166 = vxor.u32 %v160, 2147483648
    %v167 = vsel %vm165, %v159, %v166
    %vm168 = vcmp.eq.s32.totalorder %v163, 2
    %v169 = vxor.u32 %v159, 2147483648
    %v170 = vsel %vm168, %v169, %v160
    %v171 = vsel %vm164, %v167, %v170
    %v172 = vsel %vm161, nan, %v171
    %v173 = vand.u32 2147483647, %v65
    %vm174 = vcmp.le.f32.partialorder %v173, 0.7853982
    %vm175 = vcmp.lt.s32.totalorder %v65, 0
    %v176 = vand.u32 %v65, 2139095040
    %v177 = vshrl.u32 %v176, 23
    %v178 = vsub.s32 %v177, 127
    %v179 = vand.u32 2147483647, %v65
    %v180 = vand.u32 %v179, 8388607
    %v181 = vor.u32 %v180, 8388608
    %v182 = vsub.s32 0, %v181
    %v183 = vadd.s32 %v178, 1
    %vm184 = vcmp.gt.s32.totalorder %v183, 0
    %v185 = vsel %vm184, %v183, 0
    %v186 = vshrl.u32 %v185, 5
    %v187 = vand.u32 %v185, 31
    %v188 = vsub.s32 32, %v187
    %v189 = vshrl.u32 683565275, %v188
    %v190 = vshll.u32 683565275, %v187
    %v191 = vshrl.u32 2475754826, %v188
    %v192 = vor.u32 %v190, %v191
    %v193 = vshll.u32 2475754826, %v187
    %v194 = vshrl.u32 2131351028, %v188
    %v195 = vor.u32 %v193, %v194
    %v196 = vshll.u32 2131351028, %v187
    %v197 = vshrl.u32 2102212464, %v188
    %v198 = vor.u32 %v196, %v197
    %v199 = vshll.u32 2102212464, %v187
    %v200 = vshrl.u32 920167782, %v188
    %v201 = vor.u32 %v199, %v200
    %v202 = vshll.u32 920167782, %v187
    %v203 = vshrl.u32 1326507024, %v188
    %v204 = vor.u32 %v202, %v203
    %vm205 = vcmp.lt.s32.totalorder %v186, 1
    %vm206 = vcmp.lt.s32.totalorder %v186, 2
    %vm207 = vcmp.lt.s32.totalorder %v186, 3
    %vm208 = vcmp.lt.s32.totalorder %v186, 4
    %v209 = vsel %vm205, %v189, %v192
    %v210 = vsel %vm208, %v198, 2102212464
    %v211 = vsel %vm207, %v195, %v210
    %v212 = vsel %vm206, %v209, %v211
    %v213 = vsel %vm205, %v192, %v195
    %v214 = vsel %vm208, %v201, 920167782
    %v215 = vsel %vm207, %v198, %v214
    %v216 = vsel %vm206, %v213, %v215
    %v217 = vsel %vm205, %v195, %v198
    %v218 = vsel %vm208, %v204, 1326507024
    %v219 = vsel %vm207, %v201, %v218
    %v220 = vsel %vm206, %v217, %v219
    %v221 = vshll.u32 %v181, 8
    %v222 = vmul.u32.u64.compose %v221, %v220
    %v223 = vextract.low.u32 %v222
    %v224 = vextract.high.u32 %v222
    %v225 = vmul.u32.u64.compose %v221, %v216
    %v226 = vextract.low.u32 %v225
    %v227 = vextract.high.u32 %v225
    %v228 = vmul.u32 %v221, %v212
    %v229 = vadd.s32 %v224, %v226
    %vm230 = vc.u32 %v224, %v226
    %v231 = vadd.s32 %v227, 1
    %v232 = vsel %vm230, %v231, %v227
    %v233 = vadd.s32 %v228, %v232
    %v234 = vadd.s32 %v233, 536870912
    %v235 = vshrl.u32 %v234, 30
    %v236 = vshll.u32 %v235, 30
    %v237 = vsub.s32 %v233, %v236
    %vm238 = vcmp.lt.s32.totalorder %v237, 0
    %v239 = vsub.s32 0, %v237
    %v240 = vsel %vm238, %v239, %v237
    %v241 = vclz %v240
    %v242 = vsub.s32 %v241, 2
    %vm243 = vcmp.gt.s32.totalorder 0, %v242
    %v244 = vsel %vm243, 0, %v242
    %v245 = vsub.s32 32, %v244
    %v246 = vshll.u32 %v237, %v244
    %v247 = vshrl.u32 %v229, %v245
    %v248 = vor.u32 %v246, %v247
    %v249 = vsub.s32 4294967266, %v244
    %v250 = vadd.s32 %v249, 127
    %v251 = vshll.u32 %v250, 23
    %v252 = vor.u32 4788187, %v251
    %v253 = vand.u32 2147483647, %v252
    %v255 = vcvt.s32.f32 %v248
    %v256 = vmul.f32 %v255, %v253
    %v257 = vxor.u32 %v256, 2147483648
    %v258 = vsel %vm175, %v257, %v256
    %v259 = vsub.s32 4, %v235
    %v260 = vsel %vm175, %v259, %v235
    %v261 = vsel %vm174, %v65, %v258
    %v262 = vsel %vm174, 0, %v260
    %v263 = vcosq.f32.pop %v261
    %v264 = vsinq.f32.pop %v261
    %vm265 = vweird.f32 %v65
    %v266 = vand.u32 %v262, 3
    %vm267 = vcmp.lt.s32.totalorder %v266, 2
    %vm268 = vcmp.eq.s32.totalorder %v266, 0
    %v269 = vxor.u32 %v264, 2147483648
    %v270 = vsel %vm268, %v263, %v269
    %vm271 = vcmp.eq.s32.totalorder %v266, 2
    %v272 = vxor.u32 %v263, 2147483648
    %v273 = vsel %vm271, %v272, %v264
    %v274 = vsel %vm267, %v270, %v273
    %v275 = vsel %vm265, nan, %v274
    %v276 = vsel %vm68, %v172, %v275
    %v277 = vld [vmem:[#allocation2] sm:$0xff]
    %v278 = vld [vmem:[#allocation2 + $0x8] sm:$0xff]
    %v279 = vld [vmem:[#allocation2 + $0x10] sm:$0xff]
    %v280 = vld [vmem:[#allocation2 + $0x18] sm:$0xff]
    %v281 = vld [vmem:[#allocation2 + $0x20] sm:$0xff]
    %v282 = vld [vmem:[#allocation2 + $0x28] sm:$0xff]
    %v283 = vld [vmem:[#allocation2 + $0x30] sm:$0xff]
    %v284 = vld [vmem:[#allocation2 + $0x38] sm:$0xff]
    %v285 = vld [vmem:[#allocation2 + $0x40] sm:$0xff]
    %v286 = vld [vmem:[#allocation2 + $0x48] sm:$0xff]
    %v287 = vld [vmem:[#allocation2 + $0x50] sm:$0xff]
    %v288 = vld [vmem:[#allocation2 + $0x58] sm:$0xff]
    %v289 = vld [vmem:[#allocation2 + $0x60] sm:$0xff]
    %v290 = vld [vmem:[#allocation2 + $0x68] sm:$0xff]
    %v291 = vld [vmem:[#allocation2 + $0x70] sm:$0xff]
    %v292 = vld [vmem:[#allocation2 + $0x78] sm:$0xff]
    %v293 = vld [vmem:[%s3] sm:$0x1]
    %v295 = vlaneseq
    %v296 = vshrl.u32 %v295, 7
    %v297 = vsub.s32 0, %v296
    %v298 = vrot.slane %v293, %v297
    %300 = vmatprep.subr.mxu0 0.0
    %301 = vmatpush1.msra.mxu0 %v277
    %302 = vmatprep.subr.mxu0 0.0
    %303 = vmatpush1.msra.mxu0 %v278
    %304 = vmatprep.subr.mxu0 0.0
    %305 = vmatpush1.msra.mxu0 %v279
    %306 = vmatprep.subr.mxu0 0.0
    %307 = vmatpush1.msra.mxu0 %v280
    %308 = vmatprep.subr.mxu0 0.0
    %309 = vmatpush1.msra.mxu0 %v281
    %310 = vmatprep.subr.mxu0 0.0
    %311 = vmatpush1.msra.mxu0 %v282
    %312 = vmatprep.subr.mxu0 0.0
    %313 = vmatpush1.msra.mxu0 %v283
    %314 = vmatprep.subr.mxu0 0.0
    %315 = vmatpush1.msra.mxu0 %v284
    %316 = vmatprep.subr.mxu0 0.0
    %317 = vmatpush1.msra.mxu0 %v285
    %318 = vmatprep.subr.mxu0 0.0
    %319 = vmatpush1.msra.mxu0 %v286
    %320 = vmatprep.subr.mxu0 0.0
    %321 = vmatpush1.msra.mxu0 %v287
    %322 = vmatprep.subr.mxu0 0.0
    %323 = vmatpush1.msra.mxu0 %v288
    %324 = vmatprep.subr.mxu0 0.0
    %325 = vmatpush1.msra.mxu0 %v289
    %326 = vmatprep.subr.mxu0 0.0
    %327 = vmatpush1.msra.mxu0 %v290
    %328 = vmatprep.subr.mxu0 0.0
    %329 = vmatpush1.msra.mxu0 %v291
    %330 = vmatprep.subr.mxu0 0.0
    %331 = vmatpush1.msra.mxu0 %v292
    %332 = vmatprep.subr.mxu0 0.0
    %333 = vmatpush1.msra.mxu0 0.0
    %334 = vmatprep.subr.mxu0 0.0
    %335 = vmatpush1.msra.mxu0 0.0
    %336 = vmatprep.subr.mxu0 0.0
    %337 = vmatpush1.msra.mxu0 0.0
    %338 = vmatprep.subr.mxu0 0.0
    %339 = vmatpush1.msra.mxu0 0.0
    %340 = vmatprep.subr.mxu0 0.0
    %341 = vmatpush1.msra.mxu0 0.0
    %342 = vmatprep.subr.mxu0 0.0
    %343 = vmatpush1.msra.mxu0 0.0
    %344 = vmatprep.subr.mxu0 0.0
    %345 = vmatpush1.msra.mxu0 0.0
    %346 = vmatprep.subr.mxu0 0.0
    %347 = vmatpush1.msra.mxu0 0.0
    %348 = vmatprep.subr.mxu0 0.0
    %349 = vmatpush1.msra.mxu0 0.0
    %350 = vmatprep.subr.mxu0 0.0
    %351 = vmatpush1.msra.mxu0 0.0
    %352 = vmatprep.subr.mxu0 0.0
    %353 = vmatpush1.msra.mxu0 0.0
    %354 = vmatprep.subr.mxu0 0.0
    %355 = vmatpush1.msra.mxu0 0.0
    %356 = vmatprep.subr.mxu0 0.0
    %357 = vmatpush1.msra.mxu0 0.0
    %358 = vmatprep.subr.mxu0 0.0
    %359 = vmatpush1.msra.mxu0 0.0
    %360 = vmatprep.subr.mxu0 0.0
    %361 = vmatpush1.msra.mxu0 0.0
    %362 = vmatprep.subr.mxu0 0.0
    %363 = vmatpush1.msra.mxu0 0.0
    %364 = vmatprep.mubr.f32.mxu0 0.0
    %365 = vmatmul.mubr.f32.gmra.mrb[0].mxu0 %v276
    %v366 = vpop.f32.mrb[0].mxu0
    %v367 = vadd.f32 %v298, %v366
    %v368 = vpop.f32.mrb[0].mxu0
    %369 = vdwg.mxu0
    %v370 = vmul.f32 %v367, 0.5
    %v371 = vmul.f32 %v367, 0.70710677
    %v372 = vand.u32 2147483647, %v371
    %v373 = vmul.f32 %v372, 0.3275911
    %v374 = vadd.f32 %v373, 1.0
    %v375 = vrcp.pop %v374
    %v376 = vmul.f32 1.0, %v375
    %v377 = vmul.f32 %v376, 1.0614054
    %v378 = vsub.f32 %v377, 1.4531521
    %v379 = vmul.f32 %v378, %v376
    %v380 = vadd.f32 %v379, 1.4214138
    %v381 = vmul.f32 %v380, %v376
    %v382 = vsub.f32 %v381, 0.28449672
    %v383 = vmul.f32 %v382, %v376
    %v384 = vadd.f32 %v383, 0.2548296
    %v385 = vmul.f32 %v384, %v376
    %v386 = vsub.f32 0.0, %v372
    %v387 = vmul.f32 %v386, %v372
    %v388 = vmul.f32 %v387, 1.442695
    %v389 = vpow.pop %v388
    %v390 = vmul.f32 %v385, %v389
    %v391 = vsub.f32 1.0, %v390
    %vm392 = vcmp.ge.f32.partialorder %v371, 0.0
    %v393 = vsub.f32 0.0, %v391
    %v394 = vsel %vm392, %v391, %v393
    %v395 = vadd.f32 %v394, 1.0
    %v396 = vmul.f32 %v370, %v395
    %v397 = vld [vmem:[#allocation5] sm:$0xff]
    %v398 = vld [vmem:[#allocation5 + $0x8] sm:$0xff]
    %v399 = vld [vmem:[#allocation5 + $0x10] sm:$0xff]
    %v400 = vld [vmem:[#allocation5 + $0x18] sm:$0xff]
    %v401 = vld [vmem:[#allocation5 + $0x20] sm:$0xff]
    %v402 = vld [vmem:[#allocation5 + $0x28] sm:$0xff]
    %v403 = vld [vmem:[#allocation5 + $0x30] sm:$0xff]
    %v404 = vld [vmem:[#allocation5 + $0x38] sm:$0xff]
    %v405 = vld [vmem:[#allocation5 + $0x40] sm:$0xff]
    %v406 = vld [vmem:[#allocation5 + $0x48] sm:$0xff]
    %v407 = vld [vmem:[#allocation5 + $0x50] sm:$0xff]
    %v408 = vld [vmem:[#allocation5 + $0x58] sm:$0xff]
    %v409 = vld [vmem:[#allocation5 + $0x60] sm:$0xff]
    %v410 = vld [vmem:[#allocation5 + $0x68] sm:$0xff]
    %v411 = vld [vmem:[#allocation5 + $0x70] sm:$0xff]
    %v412 = vld [vmem:[#allocation5 + $0x78] sm:$0xff]
    %v413 = vld [vmem:[%s5] sm:$0x1]
    %v415 = vlaneseq
    %v416 = vshrl.u32 %v415, 7
    %v417 = vsub.s32 0, %v416
    %v418 = vrot.slane %v413, %v417
    %420 = vmatprep.subr.mxu0 0.0
    %421 = vmatpush1.msra.mxu0 %v397
    %422 = vmatprep.subr.mxu0 0.0
    %423 = vmatpush1.msra.mxu0 %v398
    %424 = vmatprep.subr.mxu0 0.0
    %425 = vmatpush1.msra.mxu0 %v399
    %426 = vmatprep.subr.mxu0 0.0
    %427 = vmatpush1.msra.mxu0 %v400
    %428 = vmatprep.subr.mxu0 0.0
    %429 = vmatpush1.msra.mxu0 %v401
    %430 = vmatprep.subr.mxu0 0.0
    %431 = vmatpush1.msra.mxu0 %v402
    %432 = vmatprep.subr.mxu0 0.0
    %433 = vmatpush1.msra.mxu0 %v403
    %434 = vmatprep.subr.mxu0 0.0
    %435 = vmatpush1.msra.mxu0 %v404
    %436 = vmatprep.subr.mxu0 0.0
    %437 = vmatpush1.msra.mxu0 %v405
    %438 = vmatprep.subr.mxu0 0.0
    %439 = vmatpush1.msra.mxu0 %v406
    %440 = vmatprep.subr.mxu0 0.0
    %441 = vmatpush1.msra.mxu0 %v407
    %442 = vmatprep.subr.mxu0 0.0
    %443 = vmatpush1.msra.mxu0 %v408
    %444 = vmatprep.subr.mxu0 0.0
    %445 = vmatpush1.msra.mxu0 %v409
    %446 = vmatprep.subr.mxu0 0.0
    %447 = vmatpush1.msra.mxu0 %v410
    %448 = vmatprep.subr.mxu0 0.0
    %449 = vmatpush1.msra.mxu0 %v411
    %450 = vmatprep.subr.mxu0 0.0
    %451 = vmatpush1.msra.mxu0 %v412
    %452 = vmatprep.subr.mxu0 0.0
    %453 = vmatpush1.msra.mxu0 0.0
    %454 = vmatprep.subr.mxu0 0.0
    %455 = vmatpush1.msra.mxu0 0.0
    %456 = vmatprep.subr.mxu0 0.0
    %457 = vmatpush1.msra.mxu0 0.0
    %458 = vmatprep.subr.mxu0 0.0
    %459 = vmatpush1.msra.mxu0 0.0
    %460 = vmatprep.subr.mxu0 0.0
    %461 = vmatpush1.msra.mxu0 0.0
    %462 = vmatprep.subr.mxu0 0.0
    %463 = vmatpush1.msra.mxu0 0.0
    %464 = vmatprep.subr.mxu0 0.0
    %465 = vmatpush1.msra.mxu0 0.0
    %466 = vmatprep.subr.mxu0 0.0
    %467 = vmatpush1.msra.mxu0 0.0
    %468 = vmatprep.subr.mxu0 0.0
    %469 = vmatpush1.msra.mxu0 0.0
    %470 = vmatprep.subr.mxu0 0.0
    %471 = vmatpush1.msra.mxu0 0.0
    %472 = vmatprep.subr.mxu0 0.0
    %473 = vmatpush1.msra.mxu0 0.0
    %474 = vmatprep.subr.mxu0 0.0
    %475 = vmatpush1.msra.mxu0 0.0
    %476 = vmatprep.subr.mxu0 0.0
    %477 = vmatpush1.msra.mxu0 0.0
    %478 = vmatprep.subr.mxu0 0.0
    %479 = vmatpush1.msra.mxu0 0.0
    %480 = vmatprep.subr.mxu0 0.0
    %481 = vmatpush1.msra.mxu0 0.0
    %482 = vmatprep.subr.mxu0 0.0
    %483 = vmatpush1.msra.mxu0 0.0
    %484 = vmatprep.mubr.f32.mxu0 0.0
    %485 = vmatmul.mubr.f32.gmra.mrb[0].mxu0 %v396
    %v486 = vpop.f32.mrb[0].mxu0
    %v487 = vadd.f32 %v418, %v486
    %v488 = vpop.f32.mrb[0].mxu0
    %489 = vdwg.mxu0
    %vm490 = vcmask 130048
    %491 = vst.msk [vmem:[#allocation7] sm:$0xff] %vm490, %v487
    // Predicated region
    $region34: #{tpu_custom_call.1} parent=1 // pred_check
      _
    $region35: #{tpu_custom_call.1} parent=1 // pred_check_branch
      %493 = sbr.rel (0) target = $region37
    $region36: #{tpu_custom_call.1} parent=1 // pred_region
      %s495 = ssub.s32 128, 128
      %496 = vsyncadd [#allocation4], %s495
      %s498 = sshll.u32 [#allocation7], 4
      %s499 = int_to_ptr.vmem [resolvable:$true] %s498
      %501 = dma.vmem_to_hbm [thread:$0]  %s499, 128, %s6, [#allocation4]
    $region37: #{tpu_custom_call.1} parent=1 // pred_fallthru
      _
    // Predicated region
    $region38: #{tpu_custom_call.1} parent=1 // pred_check
      _
    $region39: #{tpu_custom_call.1} parent=1 // pred_check_branch
      %503 = sbr.rel (0) target = $region41
    $region40: #{tpu_custom_call.1} parent=1 // pred_region
      %504 = dma.done [#allocation4], 128
    $region41: #{tpu_custom_call.1} parent=1 // pred_fallthru
      _
    %505 = vsyncpa [#allocation3], 1
    %506 = vsyncpa [#allocation6], 1
    %507 = vsyncpa [#allocation4], 1

</llo_original>
